<compile_context>
chip_gen: v6e
topology: v6e:2x2x1
jax: 0.10.0
libtpu: 0.0.40
codegen_flags: <defaults>
</compile_context>

<pallas_src>
import functools

import jax
import jax.numpy as jnp
from jax import lax
from jax.experimental import pallas as pl
from jax.experimental.pallas import tpu as pltpu


# ----------------------------------------------------------------------------
# Sub-pixel (phase) geometry of a ConvTranspose along one spatial dim.
# ----------------------------------------------------------------------------
def _tap_geometry(K, s, p):
    """Per-phase tap layout (shared by H and W since the kernel is square)."""
    pp = K - 1 - p                                        # edge pad in zero-insert view (may be < 0)
    k0 = [(pp - r) % s for r in range(s)]                 # first flipped-kernel tap of phase r
    d = [-((pp - r) // s) for r in range(s)]              # input start offset of phase r
    T = [max(0, -(-(K - k0[r]) // s)) for r in range(s)]  # number of taps of phase r
    min_d = min(d)
    Tc = max(d[r] - min_d + T[r] for r in range(s))       # union ("combined") window size
    return k0, d, T, min_d, Tc


def _spatial_geometry(L, Lout, s, min_d, Tc):
    Lq = -(-Lout // s)                                     # per-phase output length (ceil)
    PL = max(0, -min_d)                                    # left pad on the original input
    PR = max(0, (Lq - 1) + min_d + (Tc - 1) - (L - 1))     # right pad
    return Lq, PL, PR


def _build_phase_weight(W, K, s, k0, d, T, min_d, Tc):
    """Combined sub-pixel weight: (Tc*Tc*Cin, s*s*Cout), structural zeros elsewhere."""
    Cin, Cout = W.shape[0], W.shape[1]
    Wc = jnp.zeros((Tc, Tc, Cin, s, s, Cout), jnp.float32)
    for rh in range(s):
        for rw in range(s):
            for th in range(T[rh]):
                kh = k0[rh] + s * th
                uh = d[rh] - min_d + th
                for tw in range(T[rw]):
                    kw = k0[rw] + s * tw
                    uw = d[rw] - min_d + tw
                    # flipped tap of the transposed conv:
                    # Wf[kh, kw, ci, co] = W[ci, co, K-1-kh, K-1-kw]
                    Wc = Wc.at[uh, uw, :, rh, rw, :].set(W[:, :, K - 1 - kh, K - 1 - kw])
    return Wc.reshape(Tc * Tc * Cin, s * s * Cout)


def _pick_row_tile(M_total):
    """Row tile (MXU M): 256-512 rows preferred; >=2 grid blocks when there is
    enough work (both v7x TensorCores busy); multiple of 8 (sublane)."""
    tm = min(512, M_total)
    if M_total >= 256 and M_total // tm < 2:
        tm = M_total // 2
    return max(8, (tm // 8) * 8)


def _vmem_limit_bytes(TM, Kc_pad, C2):
    per_step = (TM * Kc_pad * 2      # A row tile (bf16)
                + Kc_pad * C2 * 2    # conv weight (bf16)
                + C2 * C2 * 2        # block-diag gamma^T (bf16)
                + 2 * C2 * 4         # bias + beta (f32)
                + TM * C2 * 4)       # output tile (f32)
    need = 2 * per_step + (1 << 20)  # double-buffered + headroom
    return int(min(64 << 20, max(4 << 20, need)))


# ----------------------------------------------------------------------------
# Fused kernel: bf16 conv matmul + bf16 IGDN matmul (f32 accum) + PReLU.
# ----------------------------------------------------------------------------
def decoding_block_kernel(a_ref, w_ref, b_ref, g_ref, beta_ref, alpha_ref, o_ref):
    """
    a_ref    : (TM, Kc_pad) bf16  im2col patches (rows = N*Hq*Wq folded, padded)
    w_ref    : (Kc_pad, C2) bf16  combined sub-pixel weight, C2 = s*s*Cout
    b_ref    : (1, C2)      f32   conv bias tiled over phases
    g_ref    : (C2, C2)     bf16  block-diagonal gamma^T (per-phase GDN mixing)
    beta_ref : (1, C2)      f32   GDN beta tiled over phases
    alpha_ref: (1, 1)       f32   PReLU slope (SMEM scalar)
    o_ref    : (TM, C2)     f32   phase-stacked output (lane-dense: C2 % 128 == 0)
    """
    # ConvTranspose2d (all K*K taps, all s*s phases) as ONE bf16 matmul, f32 accum.
    y = jnp.dot(a_ref[...], w_ref[...], preferred_element_type=jnp.float32) + b_ref[...]

    # Inverse GDN: norm = sqrt(beta + y^2 @ block_diag(gamma^T)); z = y * norm.
    # y^2 / gamma in bf16 (fewer MXU passes), accumulate + sqrt in f32.
    yy = (y * y).astype(jnp.bfloat16)
    lin = jnp.dot(yy, g_ref[...], preferred_element_type=jnp.float32)
    z = y * jnp.sqrt(lin + beta_ref[...])

    # PReLU with a single shared slope from SMEM (nn.PReLU() default).
    alpha = alpha_ref[0, 0]
    o_ref[...] = jnp.where(z >= 0.0, z, alpha * z).astype(o_ref.dtype)


# ----------------------------------------------------------------------------
# Wrapper: layout plumbing (NCHW<->NHWC, phase im2col, row/K padding, shuffle).
# ----------------------------------------------------------------------------
def decoding_block(x_nchw, W, bias, gamma, beta, prelu_a, *, stride, padding):
    """x_nchw: (N, Cin, H, W).  W: torch ConvTranspose2d weight (Cin, Cout, K, K)."""
    N, Cin, H, Wsp = x_nchw.shape
    Cin_w, Cout, K, _ = W.shape
    assert Cin_w == Cin
    s, p = stride, padding

    Hout = (H - 1) * s - 2 * p + K
    Wout = (Wsp - 1) * s - 2 * p + K
    assert Hout > 0 and Wout > 0
    # TODO(synk): ConvTranspose2d output_padding is not exposed by DecodingBlock; assumed 0.

    k0, d, T, min_d, Tc = _tap_geometry(K, s, p)
    Hq, PLh, PRh = _spatial_geometry(H, Hout, s, min_d, Tc)
    Wq, PLw, PRw = _spatial_geometry(Wsp, Wout, s, min_d, Tc)

    Kc = Tc * Tc * Cin
    C2 = s * s * Cout
    assert C2 % 128 == 0, "phase-stacked channel dim must be lane-aligned for this layout"

    # NCHW -> NHWC, cast to bf16 BEFORE the pad / im2col (halves wrapper traffic).
    x = jnp.transpose(x_nchw, (0, 2, 3, 1)).astype(jnp.bfloat16)
    x_pad = jnp.pad(x, ((0, 0), (PLh, PRh), (PLw, PRw), (0, 0)))

    # Wrapper-side im2col over the combined Tc x Tc window (no zero-insertion),
    # with batch folded into the row axis.
    cols = [x_pad[:, uh:uh + Hq, uw:uw + Wq, :]
            for uh in range(Tc) for uw in range(Tc)]
    M_total = N * Hq * Wq
    A = jnp.stack(cols, axis=3).reshape(M_total, Kc)

    # Combined sub-pixel weight and phase-tiled per-channel parameters.
    Wc = _build_phase_weight(W.astype(jnp.float32), K, s, k0, d, T, min_d, Tc)
    Wc = Wc.astype(jnp.bfloat16)                                   # (Kc, C2)
    bias_big = jnp.tile(bias.astype(jnp.float32), s * s).reshape(1, C2)
    beta_big = jnp.tile(beta.astype(jnp.float32), s * s).reshape(1, C2)
    g_big = jnp.kron(jnp.eye(s * s, dtype=jnp.float32),
                     jnp.transpose(gamma).astype(jnp.float32)).astype(jnp.bfloat16)
    alpha = jnp.asarray(prelu_a, jnp.float32).reshape(1, 1)

    # Pad the contraction dim to a multiple of 128 (clean MXU K passes) and the
    # row dim to a multiple of the row tile.
    Kc_pad = -(-Kc // 128) * 128
    if Kc_pad != Kc:
        A = jnp.pad(A, ((0, 0), (0, Kc_pad - Kc)))
        Wc = jnp.pad(Wc, ((0, Kc_pad - Kc), (0, 0)))

    TM = _pick_row_tile(M_total)
    M_pad = pl.cdiv(M_total, TM) * TM
    if M_pad != M_total:
        A = jnp.pad(A, ((0, M_pad - M_total), (0, 0)))

    cost = pl.CostEstimate(
        flops=2 * M_pad * Kc_pad * C2 + 2 * M_pad * C2 * C2,
        transcendentals=M_pad * C2,
        bytes_accessed=(M_pad * Kc_pad * 2 + Kc_pad * C2 * 2 + C2 * C2 * 2
                        + 2 * C2 * 4 + 4 + M_pad * C2 * 4),
    )

    out_flat = pl.pallas_call(
        decoding_block_kernel,
        out_shape=jax.ShapeDtypeStruct((M_pad, C2), jnp.float32),
        grid=(M_pad // TM,),
        in_specs=[
            pl.BlockSpec((TM, Kc_pad), lambda m: (m, 0)),           # patches (bf16)
            pl.BlockSpec((Kc_pad, C2), lambda m: (0, 0)),           # conv weight (bf16)
            pl.BlockSpec((1, C2), lambda m: (0, 0)),                # bias (f32)
            pl.BlockSpec((C2, C2), lambda m: (0, 0)),               # block-diag gamma^T (bf16)
            pl.BlockSpec((1, C2), lambda m: (0, 0)),                # beta (f32)
            pl.BlockSpec(memory_space=pltpu.MemorySpace.SMEM),      # PReLU slope (scalar)
        ],
        out_specs=pl.BlockSpec((TM, C2), lambda m: (m, 0)),
        compiler_params=pltpu.CompilerParams(
            dimension_semantics=("parallel",),
            vmem_limit_bytes=_vmem_limit_bytes(TM, Kc_pad, C2)),
        cost_estimate=cost,
    )(A, Wc, bias_big, g_big, beta_big, alpha)

    # Pixel shuffle (depth-to-space) + crop + NHWC -> NCHW in the wrapper.
    # (Kept because the module's contract is a standard NCHW conv output.)
    out = out_flat[:M_total].reshape(N, Hq, Wq, s, s, Cout)
    out = jnp.transpose(out, (0, 1, 3, 2, 4, 5)).reshape(N, Hq * s, Wq * s, Cout)
    out = out[:, :Hout, :Wout, :]
    return jnp.transpose(out, (0, 3, 1, 2))


# ----------------------------------------------------------------------------
# Plain-JAX reference (zero-insertion formulation) for verification.
# ----------------------------------------------------------------------------
def reference(x_nchw, W, bias, gamma, beta, prelu_a, *, stride, padding,
              conv_dtype=jnp.float32, gdn_dtype=jnp.float32):
    Cin, Cout, K, _ = W.shape
    x = jnp.transpose(x_nchw, (0, 2, 3, 1))
    Wf = jnp.transpose(W[:, :, ::-1, ::-1], (2, 3, 0, 1))
    pp = K - 1 - padding
    y = lax.conv_general_dilated(
        x.astype(conv_dtype), Wf.astype(conv_dtype),
        window_strides=(1, 1), padding=[(pp, pp), (pp, pp)],
        lhs_dilation=(stride, stride),
        dimension_numbers=("NHWC", "HWIO", "NHWC"),
        preferred_element_type=jnp.float32)
    y = y + bias[None, None, None, :].astype(jnp.float32)
    yy = (y * y).astype(gdn_dtype)
    lin = jnp.einsum("nhwj,ij->nhwi", yy, gamma.astype(gdn_dtype),
                     preferred_element_type=jnp.float32)
    z = y * jnp.sqrt(beta[None, None, None, :].astype(jnp.float32) + lin)
    out = jnp.where(z >= 0, z, prelu_a * z)
    return jnp.transpose(out, (0, 3, 1, 2))


if __name__ == "__main__":
    # DecodingBlock(in_channels=32, out_channels=32, kernel_size=4, stride=2, padding=1)
    # (C=32 chosen so the phase-stacked channel dim s*s*Cout == 128 lanes;
    #  N*Hq*Wq = 512 rows -> two 256-row "parallel" blocks.)
    N, Cin, Cout, H, Wsp = 2, 32, 32, 16, 16
    K, stride, padding = 4, 2, 1

    key = jax.random.PRNGKey(0)
    kw_, kb_, kx_ = jax.random.split(key, 3)

    W = 0.1 * jax.random.normal(kw_, (Cin, Cout, K, K), jnp.float32)   # ConvTranspose2d weight
    bias = 0.1 * jax.random.normal(kb_, (Cout,), jnp.float32)          # ConvTranspose2d bias
    beta = jnp.ones((Cout,), jnp.float32)                              # GDN beta init
    gamma = 0.1 * jnp.eye(Cout, dtype=jnp.float32)                     # GDN gamma init
    prelu_a = 0.25                                                     # PReLU default slope

    x = jax.random.normal(kx_, (N, Cin, H, Wsp), jnp.float32)          # NCHW input

    fwd = jax.jit(functools.partial(decoding_block, stride=stride, padding=padding))
    out = jax.block_until_ready(fwd(x, W, bias, gamma, beta, prelu_a))

    Hout = (H - 1) * stride - 2 * padding + K
    Wout = (Wsp - 1) * stride - 2 * padding + K
    assert out.shape == (N, Cout, Hout, Wout)

    # Precision-matched reference (bf16 conv inputs, bf16 GDN operands, f32 accum).
    ref_bf16 = reference(x, W, bias, gamma, beta, prelu_a,
                         stride=stride, padding=padding,
                         conv_dtype=jnp.bfloat16, gdn_dtype=jnp.bfloat16)
    assert jnp.allclose(out, ref_bf16, rtol=2e-3, atol=3e-3), \
        "mismatch vs bf16-matched reference"

    # Sanity check vs full-f32 reference (loose tolerance: bf16 MXU inputs).
    ref_f32 = reference(x, W, bias, gamma, beta, prelu_a,
                        stride=stride, padding=padding,
                        conv_dtype=jnp.float32, gdn_dtype=jnp.float32)
    assert jnp.allclose(out, ref_f32, rtol=5e-2, atol=5e-2), \
        "mismatch vs f32 reference"

    print("KERNEL_OK")
</pallas_src>

<mosaic_0001>
module attributes {stable_mosaic.version = 11 : i64} {
  func.func @decoding_block_kernel(%arg0: i32, %arg1: memref<256x384xbf16, #tpu.memory_space<vmem>>, %arg2: memref<384x128xbf16, #tpu.memory_space<vmem>>, %arg3: memref<1x128xf32, #tpu.memory_space<vmem>>, %arg4: memref<128x128xbf16, #tpu.memory_space<vmem>>, %arg5: memref<1x128xf32, #tpu.memory_space<vmem>>, %arg6: memref<1x1xf32, #tpu.memory_space<smem>>, %arg7: memref<256x128xf32, #tpu.memory_space<vmem>>) attributes {dimension_semantics = [#tpu.dimension_semantics<parallel>], iteration_bounds = array<i64: 2>, scalar_prefetch = 0 : i64, scratch_operands = 0 : i64, tpu.core_type = #tpu.core_type<tc>, window_params = [{transform_indices = @transform_0, window_bounds = array<i64: 256, 384>}, {pipeline_mode = #tpu.pipeline_mode<synchronous>, transform_indices = @transform_1, window_bounds = array<i64: 384, 128>}, {pipeline_mode = #tpu.pipeline_mode<synchronous>, transform_indices = @transform_2, window_bounds = array<i64: 1, 128>}, {pipeline_mode = #tpu.pipeline_mode<synchronous>, transform_indices = @transform_3, window_bounds = array<i64: 128, 128>}, {pipeline_mode = #tpu.pipeline_mode<synchronous>, transform_indices = @transform_4, window_bounds = array<i64: 1, 128>}, {transform_indices = @transform_5, window_bounds = array<i64: 1, 1>}, {transform_indices = @transform_6, window_bounds = array<i64: 256, 128>}]} {
    %c0 = arith.constant 0 : index
    %c0_0 = arith.constant 0 : index
    %0 = vector.load %arg1[%c0, %c0_0] : memref<256x384xbf16, #tpu.memory_space<vmem>>, vector<256x384xbf16>
    %c0_1 = arith.constant 0 : index
    %c0_2 = arith.constant 0 : index
    %1 = vector.load %arg2[%c0_1, %c0_2] : memref<384x128xbf16, #tpu.memory_space<vmem>>, vector<384x128xbf16>
    %cst = arith.constant dense<0.000000e+00> : vector<256x128xf32>
    %2 = tpu.matmul %0, %1, %cst {dimension_numbers = #tpu.dot_dimension_numbers<[1], [0], [0], [1], [0, 0, 1, 1], [], []>} : vector<256x384xbf16>, vector<384x128xbf16>, vector<256x128xf32> -> vector<256x128xf32>
    %c0_3 = arith.constant 0 : index
    %c0_4 = arith.constant 0 : index
    %3 = vector.load %arg3[%c0_3, %c0_4] : memref<1x128xf32, #tpu.memory_space<vmem>>, vector<1x128xf32>
    %4 = vector.broadcast %3 : vector<1x128xf32> to vector<256x128xf32>
    %5 = arith.addf %2, %4 : vector<256x128xf32>
    %6 = arith.mulf %5, %5 : vector<256x128xf32>
    %7 = arith.truncf %6 : vector<256x128xf32> to vector<256x128xbf16>
    %c0_5 = arith.constant 0 : index
    %c0_6 = arith.constant 0 : index
    %8 = vector.load %arg4[%c0_5, %c0_6] : memref<128x128xbf16, #tpu.memory_space<vmem>>, vector<128x128xbf16>
    %cst_7 = arith.constant dense<0.000000e+00> : vector<256x128xf32>
    %9 = tpu.matmul %7, %8, %cst_7 {dimension_numbers = #tpu.dot_dimension_numbers<[1], [0], [0], [1], [0, 0, 1, 1], [], []>} : vector<256x128xbf16>, vector<128x128xbf16>, vector<256x128xf32> -> vector<256x128xf32>
    %c0_8 = arith.constant 0 : index
    %c0_9 = arith.constant 0 : index
    %10 = vector.load %arg5[%c0_8, %c0_9] : memref<1x128xf32, #tpu.memory_space<vmem>>, vector<1x128xf32>
    %11 = vector.broadcast %10 : vector<1x128xf32> to vector<256x128xf32>
    %12 = arith.addf %9, %11 : vector<256x128xf32>
    %13 = math.sqrt %12 : vector<256x128xf32>
    %14 = arith.mulf %5, %13 : vector<256x128xf32>
    %c0_10 = arith.constant 0 : index
    %c0_11 = arith.constant 0 : index
    %15 = memref.load %arg6[%c0_10, %c0_11] : memref<1x1xf32, #tpu.memory_space<smem>>
    %cst_12 = arith.constant 0.000000e+00 : f32
    %16 = vector.broadcast %cst_12 : f32 to vector<256x128xf32>
    %17 = arith.cmpf oge, %14, %16 : vector<256x128xf32>
    %18 = vector.broadcast %15 : f32 to vector<256x128xf32>
    %19 = arith.mulf %18, %14 : vector<256x128xf32>
    %20 = arith.select %17, %14, %19 : vector<256x128xi1>, vector<256x128xf32>
    %c0_13 = arith.constant 0 : index
    %c0_14 = arith.constant 0 : index
    %21 = vector.load %arg7[%c0_13, %c0_14] : memref<256x128xf32, #tpu.memory_space<vmem>>, vector<256x128xf32>
    tpu.vector_store %arg7[%c0_13, %c0_14], %20 {strides = array<i32>} : memref<256x128xf32, #tpu.memory_space<vmem>>, vector<256x128xf32>,
    return
  }
  func.func @transform_0(%arg0: i32) -> (i32, i32) {
    %c0_i32 = arith.constant 0 : i32
    %c0_i32_0 = arith.constant 0 : i32
    return %arg0, %c0_i32 : i32, i32
  }
  func.func @transform_1(%arg0: i32) -> (i32, i32) {
    %c0_i32 = arith.constant 0 : i32
    %c0_i32_0 = arith.constant 0 : i32
    %c0_i32_1 = arith.constant 0 : i32
    return %c0_i32, %c0_i32_0 : i32, i32
  }
  func.func @transform_2(%arg0: i32) -> (i32, i32) {
    %c0_i32 = arith.constant 0 : i32
    %c0_i32_0 = arith.constant 0 : i32
    %c0_i32_1 = arith.constant 0 : i32
    return %c0_i32, %c0_i32_0 : i32, i32
  }
  func.func @transform_3(%arg0: i32) -> (i32, i32) {
    %c0_i32 = arith.constant 0 : i32
    %c0_i32_0 = arith.constant 0 : i32
    %c0_i32_1 = arith.constant 0 : i32
    return %c0_i32, %c0_i32_0 : i32, i32
  }
  func.func @transform_4(%arg0: i32) -> (i32, i32) {
    %c0_i32 = arith.constant 0 : i32
    %c0_i32_0 = arith.constant 0 : i32
    %c0_i32_1 = arith.constant 0 : i32
    return %c0_i32, %c0_i32_0 : i32, i32
  }
  func.func @transform_5(%arg0: i32) -> (i32, i32) {
    %c0_i32 = arith.constant 0 : i32
    %c0_i32_0 = arith.constant 0 : i32
    %c0_i32_1 = arith.constant 0 : i32
    return %c0_i32, %c0_i32_0 : i32, i32
  }
  func.func @transform_6(%arg0: i32) -> (i32, i32) {
    %c0_i32 = arith.constant 0 : i32
    %c0_i32_0 = arith.constant 0 : i32
    return %arg0, %c0_i32 : i32, i32
  }
}

</mosaic_0001>

<llo_original>
// kernel: tile.13
$region0: #{tile.13}
  #allocation0 [shape = 's32[1]{0}', space=sflag, size = 0x4, scoped, tag = 'scoped memory for tile.13']
  %s0 = inlined_call_operand.vmem [shape: f32[32], index: 0, kind: input, shape index: {}]
  %s1 = inlined_call_operand.vmem [shape: f32[4,32], index: 1, kind: output, shape index: {}]
  // Predicated region
  $region2: #{tile.13} parent=0 // pred_check
    _
  $region3: #{tile.13} parent=0 // pred_check_branch
    %3 = sbr.rel (0) target = $region5
  $region4: #{tile.13} parent=0 // pred_region
    _
  $region5: #{tile.13} parent=0 // pred_fallthru
    _
  %v4 = vld [vmem:[%s0] ss:$0 sm:$0xff]
  %5 = vst [vmem:[%s1] sm:$0xf] %v4

// kernel: tile.14
$region0: #{tile.14}
  %s0 = inlined_call_operand.vmem [shape: f32[4,32], index: 0, kind: input, shape index: {}]
  %s1 = inlined_call_operand.vmem [shape: f32[1,128], index: 1, kind: output, shape index: {}]
  $region1: #{tile.14} parent=0
    #allocation0 [shape = 'u8[4096]{0}', space=vmem, size = 0x1000, scoped, tag = 'scoped mem for output reshape']
    #allocation1 [shape = 'u8[4096]{0}', space=vmem, size = 0x1000, scoped, tag = 'scoped mem for input reshape']
    %s3 = sshll.u32 1, 4
    %s4 = ssub.s32 %s3, 1
    %v5 = vld [vmem:[%s0] sm:%s4]
    %6 = vst [vmem:[#allocation1] sm:%s4] %v5
    %v7 = vld [vmem:[#allocation1] sm:$0x1]
    %vm8 = vcmask 261120
    %9 = vst.msk [vmem:[#allocation0] sm:$0x1] %vm8, %v7
    %s10 = scalar_lea.vmem [#allocation1], 3
    %v11 = vld [vmem:[%s10] sm:$0x1]
    %12 = vrot.lane.b32.xlu0 %v11, 96
    %v13 = vpop.permute.xlu0 %12
    %vm14 = vcmask 1048320
    %15 = vst.msk [vmem:[#allocation0] sm:$0x1] %vm14, %v13
    %s16 = scalar_lea.vmem [#allocation1], 2
    %v17 = vld [vmem:[%s16] sm:$0x1]
    %18 = vrot.lane.b32.xlu0 %v17, 64
    %v19 = vpop.permute.xlu0 %18
    %vm20 = vcmask 785920
    %21 = vst.msk [vmem:[#allocation0] sm:$0x1] %vm20, %v19
    %s22 = scalar_lea.vmem [#allocation1], 1
    %v23 = vld [vmem:[%s22] sm:$0x1]
    %24 = vrot.lane.b32.xlu0 %v23, 32
    %v25 = vpop.permute.xlu0 %24
    %vm26 = vcmask 523520
    %27 = vst.msk [vmem:[#allocation0] sm:$0x1] %vm26, %v25
    %s29 = sshll.u32 1, 1
    %s30 = ssub.s32 %s29, 1
    %v32 = vld [vmem:[#allocation0] sm:%s30]
    %s33 = sshll.u32 1, 1
    %s34 = ssub.s32 %s33, 1
    %35 = vst [vmem:[%s1] sm:%s34] %v32

// kernel: decoding_block.1
$region0: #{decoding_block.1}
  #allocation0 [shape = 'u32[]', space=smem, size = 0x4, offset = 0x4, fixed_abs, tag = 'smem constant byte address 0x4 - core index']
  #allocation1 [shape = 'u32[144,128]{1,0:T(1,128)}', space=vmem, size = 0x12000, scoped, tag = 'internal scratch']
  #allocation2 [shape = 'f32[1,1]{1,0:T(1,128)S(6)}', space=smem, size = 0x200, scoped, tag = 'scoped memory for decoding_block.1']
  %s0 = inlined_call_operand.vmem [shape: bf16[512,384], index: 0, kind: input, shape index: {}]
  %s1 = inlined_call_operand.vmem [shape: bf16[384,128], index: 1, kind: input, shape index: {}]
  %s2 = inlined_call_operand.vmem [shape: f32[1,128], index: 2, kind: input, shape index: {}]
  %s3 = inlined_call_operand.vmem [shape: bf16[128,128], index: 3, kind: input, shape index: {}]
  %s4 = inlined_call_operand.vmem [shape: f32[1,128], index: 4, kind: input, shape index: {}]
  %s5 = inlined_call_operand.<no memory space> [shape: f32[1,1], index: 5, kind: input, shape index: {}]
  %s6 = inlined_call_operand.vmem [shape: f32[512,128], index: 6, kind: output, shape index: {}]
  %s7 = sld [smem:[#allocation0]]
  $region57: #{decoding_block.1} parent=0
    _
  %s9 = ssub.s32 1, %s7
  %s10 = scalar_select 0, %s9, %s7
  %11 = sst [smem:[#allocation2]] %s5
  loop: start=0, step=1, limit=4
  $region2: #{decoding_block.1} parent=0 // loop_pre_header
    _
  $region3: #{decoding_block.1} parent=0 // loop_header
    %s13 = sphi 0, %s17
    %p14 = scmp.ge.s32.totalorder %s13, 4
    %s23 = sphi 0, %s25
    %s26 = sphi 0, %s23
    %s27 = sphi 0, %s26
    %s43 = sphi 0, %s27
    %s47 = sphi 0, %s47
    %s49 = sphi 0, %s47
    %s50 = sphi 0, %s49
    %s64 = sphi 0, %s50
    %s68 = sphi 0, %s68
    %s70 = sphi 0, %s68
    %s71 = sphi 0, %s70
    %s85 = sphi 0, %s71
    %s89 = sphi 0, %s89
    %s91 = sphi 0, %s89
    %s92 = sphi 0, %s91
    %s106 = sphi 0, %s92
    %s110 = sphi 0, %s110
    %s112 = sphi 0, %s110
    %s113 = sphi 0, %s112
    %s127 = sphi 0, %s113
    %s131 = sphi 0, %s131
    %s133 = sphi 0, %s131
    %s134 = sphi 0, %s133
    %s148 = sphi 0, %s134
    %s154 = sphi 0, %s156
    %s157 = sphi 0, %s154
    %s158 = sphi 0, %s157
    %s174 = sphi 0, %s158
  $region4: #{decoding_block.1} parent=0 // loop_header_branch
    %16 = sbr.rel (%p14) target = $region8
  $region5: #{decoding_block.1} parent=0 // loop_body
    %s18 = ssub.s32 %s13, 1
    %s19 = ssub.s32 %s13, 2
    %s20 = sadd.s32 %s13, 1
    %s21 = ssub.s32 %s13, %s20
    %p22 = scmp.eq.s32.totalorder %s21, 0
    %s24 = sadd.s32 %s23, 1
    %s25 = scalar_select %p22, %s23, %s24
    %p28 = pneg %p22
    %p29 = scmp.eq.s32.totalorder %s13, 1
    %p30 = por %p28, %p29
    %p31 = scmp.ne.s32.totalorder %s23, %s26
    %p32 = scmp.eq.s32.totalorder %s13, 0
    %p33 = por %p31, %p32
    %p34 = scmp.ne.s32.totalorder %s23, %s26
    %p35 = scmp.eq.s32.totalorder %s18, 1
    %p36 = por %p34, %p35
    %p37 = scmp.ne.s32.totalorder %s26, %s27
    %p38 = scmp.eq.s32.totalorder %s18, 0
    %p39 = por %p37, %p38
    %p40 = scmp.ne.s32.totalorder %s26, %s27
    %p41 = scmp.eq.s32.totalorder %s19, 1
    %p42 = por %p40, %p41
    %p44 = scmp.ne.s32.totalorder %s27, %s43
    %p45 = scmp.eq.s32.totalorder %s19, 0
    %p46 = por %p44, %p45
    %s48 = sadd.s32 %s47, 1
    %p51 = scmp.eq.s32.totalorder %s13, 1
    %p52 = scmp.ne.s32.totalorder %s47, %s49
    %p53 = scmp.eq.s32.totalorder %s13, 0
    %p54 = por %p52, %p53
    %p55 = scmp.ne.s32.totalorder %s47, %s49
    %p56 = scmp.eq.s32.totalorder %s18, 1
    %p57 = por %p55, %p56
    %p58 = scmp.ne.s32.totalorder %s49, %s50
    %p59 = scmp.eq.s32.totalorder %s18, 0
    %p60 = por %p58, %p59
    %p61 = scmp.ne.s32.totalorder %s49, %s50
    %p62 = scmp.eq.s32.totalorder %s19, 1
    %p63 = por %p61, %p62
    %p65 = scmp.ne.s32.totalorder %s50, %s64
    %p66 = scmp.eq.s32.totalorder %s19, 0
    %p67 = por %p65, %p66
    %s69 = sadd.s32 %s68, 1
    %p72 = scmp.eq.s32.totalorder %s13, 1
    %p73 = scmp.ne.s32.totalorder %s68, %s70
    %p74 = scmp.eq.s32.totalorder %s13, 0
    %p75 = por %p73, %p74
    %p76 = scmp.ne.s32.totalorder %s68, %s70
    %p77 = scmp.eq.s32.totalorder %s18, 1
    %p78 = por %p76, %p77
    %p79 = scmp.ne.s32.totalorder %s70, %s71
    %p80 = scmp.eq.s32.totalorder %s18, 0
    %p81 = por %p79, %p80
    %p82 = scmp.ne.s32.totalorder %s70, %s71
    %p83 = scmp.eq.s32.totalorder %s19, 1
    %p84 = por %p82, %p83
    %p86 = scmp.ne.s32.totalorder %s71, %s85
    %p87 = scmp.eq.s32.totalorder %s19, 0
    %p88 = por %p86, %p87
    %s90 = sadd.s32 %s89, 1
    %p93 = scmp.eq.s32.totalorder %s13, 1
    %p94 = scmp.ne.s32.totalorder %s89, %s91
    %p95 = scmp.eq.s32.totalorder %s13, 0
    %p96 = por %p94, %p95
    %p97 = scmp.ne.s32.totalorder %s89, %s91
    %p98 = scmp.eq.s32.totalorder %s18, 1
    %p99 = por %p97, %p98
    %p100 = scmp.ne.s32.totalorder %s91, %s92
    %p101 = scmp.eq.s32.totalorder %s18, 0
    %p102 = por %p100, %p101
    %p103 = scmp.ne.s32.totalorder %s91, %s92
    %p104 = scmp.eq.s32.totalorder %s19, 1
    %p105 = por %p103, %p104
    %p107 = scmp.ne.s32.totalorder %s92, %s106
    %p108 = scmp.eq.s32.totalorder %s19, 0
    %p109 = por %p107, %p108
    %s111 = sadd.s32 %s110, 1
    %p114 = scmp.eq.s32.totalorder %s13, 1
    %p115 = scmp.ne.s32.totalorder %s110, %s112
    %p116 = scmp.eq.s32.totalorder %s13, 0
    %p117 = por %p115, %p116
    %p118 = scmp.ne.s32.totalorder %s110, %s112
    %p119 = scmp.eq.s32.totalorder %s18, 1
    %p120 = por %p118, %p119
    %p121 = scmp.ne.s32.totalorder %s112, %s113
    %p122 = scmp.eq.s32.totalorder %s18, 0
    %p123 = por %p121, %p122
    %p124 = scmp.ne.s32.totalorder %s112, %s113
    %p125 = scmp.eq.s32.totalorder %s19, 1
    %p126 = por %p124, %p125
    %p128 = scmp.ne.s32.totalorder %s113, %s127
    %p129 = scmp.eq.s32.totalorder %s19, 0
    %p130 = por %p128, %p129
    %s132 = sadd.s32 %s131, 1
    %p135 = scmp.eq.s32.totalorder %s13, 1
    %p136 = scmp.ne.s32.totalorder %s131, %s133
    %p137 = scmp.eq.s32.totalorder %s13, 0
    %p138 = por %p136, %p137
    %p139 = scmp.ne.s32.totalorder %s131, %s133
    %p140 = scmp.eq.s32.totalorder %s18, 1
    %p141 = por %p139, %p140
    %p142 = scmp.ne.s32.totalorder %s133, %s134
    %p143 = scmp.eq.s32.totalorder %s18, 0
    %p144 = por %p142, %p143
    %p145 = scmp.ne.s32.totalorder %s133, %s134
    %p146 = scmp.eq.s32.totalorder %s19, 1
    %p147 = por %p145, %p146
    %p149 = scmp.ne.s32.totalorder %s134, %s148
    %p150 = scmp.eq.s32.totalorder %s19, 0
    %p151 = por %p149, %p150
    %s152 = ssub.s32 %s13, %s20
    %p153 = scmp.eq.s32.totalorder %s152, 0
    %s155 = sadd.s32 %s154, 1
    %s156 = scalar_select %p153, %s154, %s155
    %p159 = pneg %p153
    %p160 = scmp.eq.s32.totalorder %s13, 1
    %p161 = por %p159, %p160
    %p162 = scmp.ne.s32.totalorder %s154, %s157
    %p163 = scmp.eq.s32.totalorder %s13, 0
    %p164 = por %p162, %p163
    %p165 = scmp.ne.s32.totalorder %s154, %s157
    %p166 = scmp.eq.s32.totalorder %s18, 1
    %p167 = por %p165, %p166
    %p168 = scmp.ne.s32.totalorder %s157, %s158
    %p169 = scmp.eq.s32.totalorder %s18, 0
    %p170 = por %p168, %p169
    %p171 = scmp.ne.s32.totalorder %s157, %s158
    %p172 = scmp.eq.s32.totalorder %s19, 1
    %p173 = por %p171, %p172
    %p175 = scmp.ne.s32.totalorder %s158, %s174
    %p176 = scmp.eq.s32.totalorder %s19, 0
    %p177 = por %p175, %p176
    %p178 = scmp.le.s32.totalorder 1, %s13
    %p179 = scmp.lt.s32.totalorder %s13, 3
    %p180 = pnand %p178, %p179
    %p181 = pneg %p180
    // Predicated region
    $region9: #{decoding_block.1} parent=5 // pred_check
      _
    $region10: #{decoding_block.1} parent=5 // pred_check_branch
      %183 = sbr.rel (%p180) target = $region12
    $region11: #{decoding_block.1} parent=5 // pred_region
      %s184 = ssub.s32 %s13, 1
      // Predicated region
      $region13: #{decoding_block.1} parent=11 // pred_check
        %p185 = pneg %p60
      $region14: #{decoding_block.1} parent=11 // pred_check_branch
        %187 = sbr.rel (%p185) target = $region16
      $region15: #{decoding_block.1} parent=11 // pred_region
        _
      $region16: #{decoding_block.1} parent=11 // pred_fallthru
        _
      // Predicated region
      $region17: #{decoding_block.1} parent=11 // pred_check
        %p188 = pneg %p81
      $region18: #{decoding_block.1} parent=11 // pred_check_branch
        %190 = sbr.rel (%p188) target = $region20
      $region19: #{decoding_block.1} parent=11 // pred_region
        _
      $region20: #{decoding_block.1} parent=11 // pred_fallthru
        _
      // Predicated region
      $region21: #{decoding_block.1} parent=11 // pred_check
        %p191 = pneg %p102
      $region22: #{decoding_block.1} parent=11 // pred_check_branch
        %193 = sbr.rel (%p191) target = $region24
      $region23: #{decoding_block.1} parent=11 // pred_region
        _
      $region24: #{decoding_block.1} parent=11 // pred_fallthru
        _
      // Predicated region
      $region25: #{decoding_block.1} parent=11 // pred_check
        %p194 = pneg %p123
      $region26: #{decoding_block.1} parent=11 // pred_check_branch
        %196 = sbr.rel (%p194) target = $region28
      $region27: #{decoding_block.1} parent=11 // pred_region
        _
      $region28: #{decoding_block.1} parent=11 // pred_fallthru
        _
      // Predicated region
      $region29: #{decoding_block.1} parent=11 // pred_check
        %p197 = pneg %p144
      $region30: #{decoding_block.1} parent=11 // pred_check_branch
        %199 = sbr.rel (%p197) target = $region32
      $region31: #{decoding_block.1} parent=11 // pred_region
        _
      $region32: #{decoding_block.1} parent=11 // pred_fallthru
        _
    $region12: #{decoding_block.1} parent=5 // pred_fallthru
      _
    %p200 = scmp.lt.s32.totalorder %s13, 2
    // Predicated region
    $region33: #{decoding_block.1} parent=5 // pred_check
      %p201 = pneg %p200
    $region34: #{decoding_block.1} parent=5 // pred_check_branch
      %203 = sbr.rel (%p201) target = $region36
    $region35: #{decoding_block.1} parent=5 // pred_region
      // Predicated region
      $region37: #{decoding_block.1} parent=35 // pred_check
        %p204 = pneg %p33
      $region38: #{decoding_block.1} parent=35 // pred_check_branch
        %206 = sbr.rel (%p204) target = $region40
      $region39: #{decoding_block.1} parent=35 // pred_region
        %s207 = smul.u32 32, %s13
        %p208 = scmp.lt.s32.totalorder %s207, 63
        %s209 = scalar_select %p208, %s207, 63
        %s210 = smul.addr %s209, 3
        %s211 = smul.addr %s210, 4
        %s212 = scalar_lea.vmem %s0, %s211
        %s213 = smul.u32 32, %s13
      $region40: #{decoding_block.1} parent=35 // pred_fallthru
        _
    $region36: #{decoding_block.1} parent=5 // pred_fallthru
      _
    %p214 = scmp.le.s32.totalorder 1, %s13
    %p215 = scmp.lt.s32.totalorder %s13, 3
    %p216 = pnand %p214, %p215
    %p217 = pneg %p216
    // Predicated region
    $region41: #{decoding_block.1} parent=5 // pred_check
      _
    $region42: #{decoding_block.1} parent=5 // pred_check_branch
      %219 = sbr.rel (%p216) target = $region44
    $region43: #{decoding_block.1} parent=5 // pred_region
      %s220 = ssub.s32 %s13, 1
      %s221 = smul.u32 32, %s18
      %p222 = scmp.lt.s32.totalorder %s221, 63
      %s223 = scalar_select %p222, %s221, 63
      %s224 = smul.addr %s223, 3
      %s225 = smul.addr %s224, 4
      %s226 = scalar_lea.vmem %s0, %s225
      %p227 = pneg %p39
      %p228 = pneg %p36
      %p229 = pneg %p60
      %p230 = pneg %p57
      %p231 = pneg %p81
      %p232 = pneg %p78
      %p233 = pneg %p102
      %p234 = pneg %p99
      %p235 = pneg %p123
      %p236 = pneg %p120
      %p237 = pneg %p144
      %p238 = pneg %p141
      %p239 = pneg %p170
      %p240 = pneg %p167
      %s241 = smul.u32 32, %s18
      %p242 = scmp.lt.s32.totalorder %s241, 63
      %s243 = scalar_select %p242, %s241, 63
      %s244 = smul.addr %s243, 8
      %s245 = scalar_lea.vmem %s6, %s244
      %s246 = smul.u32 32, %s18
      %p247 = scmp.lt.s32.totalorder %s246, 63
      %s248 = scalar_select %p247, %s246, 63
      %s249 = smul.addr %s248, 3
      %s250 = smul.addr %s249, 4
      %s251 = scalar_lea.vmem %s0, %s250
      %s252 = smul.u32 32, %s18
      %s253 = smul.u32 32, %s18
      %p254 = scmp.lt.s32.totalorder %s253, 63
      %s255 = scalar_select %p254, %s253, 63
      %s256 = smul.addr %s255, 8
      %s257 = scalar_lea.vmem %s6, %s256
      %s258 = smul.u32 32, %s18
      %v260 = vld [vmem:[%s251] sm:$0xff]
      %v261 = vld [vmem:[%s251 + $0x8] sm:$0xf]
      %v262 = vld [vmem:[%s251 + $0xc] sm:$0xff]
      %v263 = vld [vmem:[%s251 + $0x14] sm:$0xf]
      %v264 = vld [vmem:[%s251 + $0x18] sm:$0xff]
      %v265 = vld [vmem:[%s251 + $0x20] sm:$0xf]
      %v266 = vld [vmem:[%s251 + $0x24] sm:$0xff]
      %v267 = vld [vmem:[%s251 + $0x2c] sm:$0xf]
      %v268 = vld [vmem:[%s251 + $0x30] sm:$0xff]
      %v269 = vld [vmem:[%s251 + $0x38] sm:$0xf]
      %v270 = vld [vmem:[%s251 + $0x3c] sm:$0xff]
      %v271 = vld [vmem:[%s251 + $0x44] sm:$0xf]
      %v272 = vld [vmem:[%s251 + $0x48] sm:$0xff]
      %v273 = vld [vmem:[%s251 + $0x50] sm:$0xf]
      %v274 = vld [vmem:[%s251 + $0x54] sm:$0xff]
      %v275 = vld [vmem:[%s251 + $0x5c] sm:$0xf]
      %v276 = vld [vmem:[%s251 + $0x60] sm:$0xff]
      %v277 = vld [vmem:[%s251 + $0x68] sm:$0xf]
      %v278 = vld [vmem:[%s251 + $0x6c] sm:$0xff]
      %v279 = vld [vmem:[%s251 + $0x74] sm:$0xf]
      %v280 = vld [vmem:[%s251 + $0x78] sm:$0xff]
      %v281 = vld [vmem:[%s251 + $0x80] sm:$0xf]
      %v282 = vld [vmem:[%s251 + $0x84] sm:$0xff]
      %v283 = vld [vmem:[%s251 + $0x8c] sm:$0xf]
      %v284 = vld [vmem:[%s251 + $0x90] sm:$0xff]
      %v285 = vld [vmem:[%s251 + $0x98] sm:$0xf]
      %v286 = vld [vmem:[%s251 + $0x9c] sm:$0xff]
      %v287 = vld [vmem:[%s251 + $0xa4] sm:$0xf]
      %v288 = vld [vmem:[%s251 + $0xa8] sm:$0xff]
      %v289 = vld [vmem:[%s251 + $0xb0] sm:$0xf]
      %v290 = vld [vmem:[%s251 + $0xb4] sm:$0xff]
      %v291 = vld [vmem:[%s251 + $0xbc] sm:$0xf]
      %v292 = vld [vmem:[%s251 + $0xc0] sm:$0xff]
      %v293 = vld [vmem:[%s251 + $0xc8] sm:$0xf]
      %v294 = vld [vmem:[%s251 + $0xcc] sm:$0xff]
      %v295 = vld [vmem:[%s251 + $0xd4] sm:$0xf]
      %v296 = vld [vmem:[%s251 + $0xd8] sm:$0xff]
      %v297 = vld [vmem:[%s251 + $0xe0] sm:$0xf]
      %v298 = vld [vmem:[%s251 + $0xe4] sm:$0xff]
      %v299 = vld [vmem:[%s251 + $0xec] sm:$0xf]
      %v300 = vld [vmem:[%s251 + $0xf0] sm:$0xff]
      %v301 = vld [vmem:[%s251 + $0xf8] sm:$0xf]
      %v302 = vld [vmem:[%s251 + $0xfc] sm:$0xff]
      %v303 = vld [vmem:[%s251 + $0x104] sm:$0xf]
      %v304 = vld [vmem:[%s251 + $0x108] sm:$0xff]
      %v305 = vld [vmem:[%s251 + $0x110] sm:$0xf]
      %v306 = vld [vmem:[%s251 + $0x114] sm:$0xff]
      %v307 = vld [vmem:[%s251 + $0x11c] sm:$0xf]
      %v308 = vld [vmem:[%s251 + $0x120] sm:$0xff]
      %v309 = vld [vmem:[%s251 + $0x128] sm:$0xf]
      %v310 = vld [vmem:[%s251 + $0x12c] sm:$0xff]
      %v311 = vld [vmem:[%s251 + $0x134] sm:$0xf]
      %v312 = vld [vmem:[%s251 + $0x138] sm:$0xff]
      %v313 = vld [vmem:[%s251 + $0x140] sm:$0xf]
      %v314 = vld [vmem:[%s251 + $0x144] sm:$0xff]
      %v315 = vld [vmem:[%s251 + $0x14c] sm:$0xf]
      %v316 = vld [vmem:[%s251 + $0x150] sm:$0xff]
      %v317 = vld [vmem:[%s251 + $0x158] sm:$0xf]
      %v318 = vld [vmem:[%s251 + $0x15c] sm:$0xff]
      %v319 = vld [vmem:[%s251 + $0x164] sm:$0xf]
      %v320 = vld [vmem:[%s251 + $0x168] sm:$0xff]
      %v321 = vld [vmem:[%s251 + $0x170] sm:$0xf]
      %v322 = vld [vmem:[%s251 + $0x174] sm:$0xff]
      %v323 = vld [vmem:[%s251 + $0x17c] sm:$0xf]
      %v324 = vld [vmem:[%s1] sm:$0xf]
      %v325 = vld [vmem:[%s1 + $0x4] sm:$0xf]
      %v326 = vld [vmem:[%s1 + $0x8] sm:$0xf]
      %v327 = vld [vmem:[%s1 + $0xc] sm:$0xf]
      %v328 = vld [vmem:[%s1 + $0x10] sm:$0xf]
      %v329 = vld [vmem:[%s1 + $0x14] sm:$0xf]
      %v330 = vld [vmem:[%s1 + $0x18] sm:$0xf]
      %v331 = vld [vmem:[%s1 + $0x1c] sm:$0xf]
      %v332 = vld [vmem:[%s1 + $0x20] sm:$0xf]
      %v333 = vld [vmem:[%s1 + $0x24] sm:$0xf]
      %v334 = vld [vmem:[%s1 + $0x28] sm:$0xf]
      %v335 = vld [vmem:[%s1 + $0x2c] sm:$0xf]
      %v336 = vld [vmem:[%s1 + $0x30] sm:$0xf]
      %v337 = vld [vmem:[%s1 + $0x34] sm:$0xf]
      %v338 = vld [vmem:[%s1 + $0x38] sm:$0xf]
      %v339 = vld [vmem:[%s1 + $0x3c] sm:$0xf]
      %v340 = vld [vmem:[%s1 + $0x40] sm:$0xf]
      %v341 = vld [vmem:[%s1 + $0x44] sm:$0xf]
      %v342 = vld [vmem:[%s1 + $0x48] sm:$0xf]
      %v343 = vld [vmem:[%s1 + $0x4c] sm:$0xf]
      %v344 = vld [vmem:[%s1 + $0x50] sm:$0xf]
      %v345 = vld [vmem:[%s1 + $0x54] sm:$0xf]
      %v346 = vld [vmem:[%s1 + $0x58] sm:$0xf]
      %v347 = vld [vmem:[%s1 + $0x5c] sm:$0xf]
      %v348 = vld [vmem:[%s1 + $0x60] sm:$0xf]
      %v349 = vld [vmem:[%s1 + $0x64] sm:$0xf]
      %v350 = vld [vmem:[%s1 + $0x68] sm:$0xf]
      %v351 = vld [vmem:[%s1 + $0x6c] sm:$0xf]
      %v352 = vld [vmem:[%s1 + $0x70] sm:$0xf]
      %v353 = vld [vmem:[%s1 + $0x74] sm:$0xf]
      %v354 = vld [vmem:[%s1 + $0x78] sm:$0xf]
      %v355 = vld [vmem:[%s1 + $0x7c] sm:$0xf]
      %v356 = vld [vmem:[%s1 + $0x80] sm:$0xf]
      %v357 = vld [vmem:[%s1 + $0x84] sm:$0xf]
      %v358 = vld [vmem:[%s1 + $0x88] sm:$0xf]
      %v359 = vld [vmem:[%s1 + $0x8c] sm:$0xf]
      %v360 = vld [vmem:[%s1 + $0x90] sm:$0xf]
      %v361 = vld [vmem:[%s1 + $0x94] sm:$0xf]
      %v362 = vld [vmem:[%s1 + $0x98] sm:$0xf]
      %v363 = vld [vmem:[%s1 + $0x9c] sm:$0xf]
      %v364 = vld [vmem:[%s1 + $0xa0] sm:$0xf]
      %v365 = vld [vmem:[%s1 + $0xa4] sm:$0xf]
      %v366 = vld [vmem:[%s1 + $0xa8] sm:$0xf]
      %v367 = vld [vmem:[%s1 + $0xac] sm:$0xf]
      %v368 = vld [vmem:[%s1 + $0xb0] sm:$0xf]
      %v369 = vld [vmem:[%s1 + $0xb4] sm:$0xf]
      %v370 = vld [vmem:[%s1 + $0xb8] sm:$0xf]
      %v371 = vld [vmem:[%s1 + $0xbc] sm:$0xf]
      %v372 = vld [vmem:[%s2] sm:$0x1]
      %v374 = vlaneseq
      %v375 = vshrl.u32 %v374, 7
      %v376 = vsub.s32 0, %v375
      %v377 = vrot.slane %v372, %v376
      %v443 = vunpack.c.l.b16 %v260
      %v444 = vunpack.c.h.b16 %v260
      %v445 = vunpack.c.l.b16 %v261
      %v446 = vunpack.c.l.b16 %v262
      %v447 = vunpack.c.h.b16 %v262
      %v448 = vunpack.c.l.b16 %v263
      %v449 = vunpack.c.l.b16 %v264
      %v450 = vunpack.c.h.b16 %v264
      %v451 = vunpack.c.l.b16 %v265
      %v452 = vunpack.c.l.b16 %v266
      %v453 = vunpack.c.h.b16 %v266
      %v454 = vunpack.c.l.b16 %v267
      %v455 = vunpack.c.l.b16 %v268
      %v456 = vunpack.c.h.b16 %v268
      %v457 = vunpack.c.l.b16 %v269
      %v458 = vunpack.c.l.b16 %v270
      %v459 = vunpack.c.h.b16 %v270
      %v460 = vunpack.c.l.b16 %v271
      %v461 = vunpack.c.l.b16 %v272
      %v462 = vunpack.c.h.b16 %v272
      %v463 = vunpack.c.l.b16 %v273
      %v464 = vunpack.c.l.b16 %v274
      %v465 = vunpack.c.h.b16 %v274
      %v466 = vunpack.c.l.b16 %v275
      %v467 = vunpack.c.l.b16 %v276
      %v468 = vunpack.c.h.b16 %v276
      %v469 = vunpack.c.l.b16 %v277
      %v470 = vunpack.c.l.b16 %v278
      %v471 = vunpack.c.h.b16 %v278
      %v472 = vunpack.c.l.b16 %v279
      %v473 = vunpack.c.l.b16 %v280
      %v474 = vunpack.c.h.b16 %v280
      %v475 = vunpack.c.l.b16 %v281
      %v476 = vunpack.c.l.b16 %v282
      %v477 = vunpack.c.h.b16 %v282
      %v478 = vunpack.c.l.b16 %v283
      %v479 = vunpack.c.l.b16 %v284
      %v480 = vunpack.c.h.b16 %v284
      %v481 = vunpack.c.l.b16 %v285
      %v482 = vunpack.c.l.b16 %v286
      %v483 = vunpack.c.h.b16 %v286
      %v484 = vunpack.c.l.b16 %v287
      %v485 = vunpack.c.l.b16 %v288
      %v486 = vunpack.c.h.b16 %v288
      %v487 = vunpack.c.l.b16 %v289
      %v488 = vunpack.c.l.b16 %v290
      %v489 = vunpack.c.h.b16 %v290
      %v490 = vunpack.c.l.b16 %v291
      %v491 = vunpack.c.l.b16 %v292
      %v492 = vunpack.c.h.b16 %v292
      %v493 = vunpack.c.l.b16 %v293
      %v494 = vunpack.c.l.b16 %v294
      %v495 = vunpack.c.h.b16 %v294
      %v496 = vunpack.c.l.b16 %v295
      %v497 = vunpack.c.l.b16 %v296
      %v498 = vunpack.c.h.b16 %v296
      %v499 = vunpack.c.l.b16 %v297
      %v500 = vunpack.c.l.b16 %v298
      %v501 = vunpack.c.h.b16 %v298
      %v502 = vunpack.c.l.b16 %v299
      %v503 = vunpack.c.l.b16 %v300
      %v504 = vunpack.c.h.b16 %v300
      %v505 = vunpack.c.l.b16 %v301
      %v506 = vunpack.c.l.b16 %v302
      %v507 = vunpack.c.h.b16 %v302
      %v508 = vunpack.c.l.b16 %v303
      %v509 = vunpack.c.l.b16 %v304
      %v510 = vunpack.c.h.b16 %v304
      %v511 = vunpack.c.l.b16 %v305
      %v512 = vunpack.c.l.b16 %v306
      %v513 = vunpack.c.h.b16 %v306
      %v514 = vunpack.c.l.b16 %v307
      %v515 = vunpack.c.l.b16 %v308
      %v516 = vunpack.c.h.b16 %v308
      %v517 = vunpack.c.l.b16 %v309
      %v518 = vunpack.c.l.b16 %v310
      %v519 = vunpack.c.h.b16 %v310
      %v520 = vunpack.c.l.b16 %v311
      %v521 = vunpack.c.l.b16 %v312
      %v522 = vunpack.c.h.b16 %v312
      %v523 = vunpack.c.l.b16 %v313
      %v524 = vunpack.c.l.b16 %v314
      %v525 = vunpack.c.h.b16 %v314
      %v526 = vunpack.c.l.b16 %v315
      %v527 = vunpack.c.l.b16 %v316
      %v528 = vunpack.c.h.b16 %v316
      %v529 = vunpack.c.l.b16 %v317
      %v530 = vunpack.c.l.b16 %v318
      %v531 = vunpack.c.h.b16 %v318
      %v532 = vunpack.c.l.b16 %v319
      %v533 = vunpack.c.l.b16 %v320
      %v534 = vunpack.c.h.b16 %v320
      %v535 = vunpack.c.l.b16 %v321
      %v536 = vunpack.c.l.b16 %v322
      %v537 = vunpack.c.h.b16 %v322
      %v538 = vunpack.c.l.b16 %v323
      %v539 = vpack.c.b16 %v446, %v443
      %v540 = vpack.c.b16 %v447, %v444
      %v541 = vpack.c.b16 %v448, %v445
      %v542 = vpack.c.b16 %v452, %v449
      %v543 = vpack.c.b16 %v453, %v450
      %v544 = vpack.c.b16 %v454, %v451
      %v545 = vpack.c.b16 %v458, %v455
      %v546 = vpack.c.b16 %v459, %v456
      %v547 = vpack.c.b16 %v460, %v457
      %v548 = vpack.c.b16 %v464, %v461
      %v549 = vpack.c.b16 %v465, %v462
      %v550 = vpack.c.b16 %v466, %v463
      %v551 = vpack.c.b16 %v470, %v467
      %v552 = vpack.c.b16 %v471, %v468
      %v553 = vpack.c.b16 %v472, %v469
      %v554 = vpack.c.b16 %v476, %v473
      %v555 = vpack.c.b16 %v477, %v474
      %v556 = vpack.c.b16 %v478, %v475
      %v557 = vpack.c.b16 %v482, %v479
      %v558 = vpack.c.b16 %v483, %v480
      %v559 = vpack.c.b16 %v484, %v481
      %v560 = vpack.c.b16 %v488, %v485
      %v561 = vpack.c.b16 %v489, %v486
      %v562 = vpack.c.b16 %v490, %v487
      %v563 = vpack.c.b16 %v494, %v491
      %v564 = vpack.c.b16 %v495, %v492
      %v565 = vpack.c.b16 %v496, %v493
      %v566 = vpack.c.b16 %v500, %v497
      %v567 = vpack.c.b16 %v501, %v498
      %v568 = vpack.c.b16 %v502, %v499
      %v569 = vpack.c.b16 %v506, %v503
      %v570 = vpack.c.b16 %v507, %v504
      %v571 = vpack.c.b16 %v508, %v505
      %v572 = vpack.c.b16 %v512, %v509
      %v573 = vpack.c.b16 %v513, %v510
      %v574 = vpack.c.b16 %v514, %v511
      %v575 = vpack.c.b16 %v518, %v515
      %v576 = vpack.c.b16 %v519, %v516
      %v577 = vpack.c.b16 %v520, %v517
      %v578 = vpack.c.b16 %v524, %v521
      %v579 = vpack.c.b16 %v525, %v522
      %v580 = vpack.c.b16 %v526, %v523
      %v581 = vpack.c.b16 %v530, %v527
      %v582 = vpack.c.b16 %v531, %v528
      %v583 = vpack.c.b16 %v532, %v529
      %v584 = vpack.c.b16 %v536, %v533
      %v585 = vpack.c.b16 %v537, %v534
      %v586 = vpack.c.b16 %v538, %v535
      %v683 = vunpack.c.l.b16 %v324
      %v684 = vunpack.c.l.b16 %v325
      %v685 = vunpack.c.l.b16 %v326
      %v686 = vunpack.c.l.b16 %v327
      %v687 = vunpack.c.l.b16 %v328
      %v688 = vunpack.c.l.b16 %v329
      %v689 = vunpack.c.l.b16 %v330
      %v690 = vunpack.c.l.b16 %v331
      %v691 = vunpack.c.l.b16 %v332
      %v692 = vunpack.c.l.b16 %v333
      %v693 = vunpack.c.l.b16 %v334
      %v694 = vunpack.c.l.b16 %v335
      %v695 = vunpack.c.l.b16 %v336
      %v696 = vunpack.c.l.b16 %v337
      %v697 = vunpack.c.l.b16 %v338
      %v698 = vunpack.c.l.b16 %v339
      %v699 = vunpack.c.l.b16 %v340
      %v700 = vunpack.c.l.b16 %v341
      %v701 = vunpack.c.l.b16 %v342
      %v702 = vunpack.c.l.b16 %v343
      %v703 = vunpack.c.l.b16 %v344
      %v704 = vunpack.c.l.b16 %v345
      %v705 = vunpack.c.l.b16 %v346
      %v706 = vunpack.c.l.b16 %v347
      %v707 = vunpack.c.l.b16 %v348
      %v708 = vunpack.c.l.b16 %v349
      %v709 = vunpack.c.l.b16 %v350
      %v710 = vunpack.c.l.b16 %v351
      %v711 = vunpack.c.l.b16 %v352
      %v712 = vunpack.c.l.b16 %v353
      %v713 = vunpack.c.l.b16 %v354
      %v714 = vunpack.c.l.b16 %v355
      %v715 = vunpack.c.l.b16 %v356
      %v716 = vunpack.c.l.b16 %v357
      %v717 = vunpack.c.l.b16 %v358
      %v718 = vunpack.c.l.b16 %v359
      %v719 = vunpack.c.l.b16 %v360
      %v720 = vunpack.c.l.b16 %v361
      %v721 = vunpack.c.l.b16 %v362
      %v722 = vunpack.c.l.b16 %v363
      %v723 = vunpack.c.l.b16 %v364
      %v724 = vunpack.c.l.b16 %v365
      %v725 = vunpack.c.l.b16 %v366
      %v726 = vunpack.c.l.b16 %v367
      %v727 = vunpack.c.l.b16 %v368
      %v728 = vunpack.c.l.b16 %v369
      %v729 = vunpack.c.l.b16 %v370
      %v730 = vunpack.c.l.b16 %v371
      %v731 = vpack.c.b16 %v684, %v683
      %v732 = vpack.c.b16 %v686, %v685
      %v733 = vpack.c.b16 %v688, %v687
      %v734 = vpack.c.b16 %v690, %v689
      %v735 = vpack.c.b16 %v692, %v691
      %v736 = vpack.c.b16 %v694, %v693
      %v737 = vpack.c.b16 %v696, %v695
      %v738 = vpack.c.b16 %v698, %v697
      %v739 = vpack.c.b16 %v700, %v699
      %v740 = vpack.c.b16 %v702, %v701
      %v741 = vpack.c.b16 %v704, %v703
      %v742 = vpack.c.b16 %v706, %v705
      %v743 = vpack.c.b16 %v708, %v707
      %v744 = vpack.c.b16 %v710, %v709
      %v745 = vpack.c.b16 %v712, %v711
      %v746 = vpack.c.b16 %v714, %v713
      %v747 = vpack.c.b16 %v716, %v715
      %v748 = vpack.c.b16 %v718, %v717
      %v749 = vpack.c.b16 %v720, %v719
      %v750 = vpack.c.b16 %v722, %v721
      %v751 = vpack.c.b16 %v724, %v723
      %v752 = vpack.c.b16 %v726, %v725
      %v753 = vpack.c.b16 %v728, %v727
      %v754 = vpack.c.b16 %v730, %v729
      %779 = vmatprep.subr.bf16.mxu0 0
      %780 = vmatpush1.bf16.msra.mxu0 %v738
      %781 = vmatprep.subr.bf16.mxu0 0
      %782 = vmatpush1.bf16.msra.mxu0 %v737
      %783 = vmatprep.subr.bf16.mxu0 0
      %784 = vmatpush1.bf16.msra.mxu0 %v736
      %785 = vmatprep.subr.bf16.mxu0 0
      %786 = vmatpush1.bf16.msra.mxu0 %v735
      %787 = vmatprep.subr.bf16.mxu0 0
      %788 = vmatpush1.bf16.msra.mxu0 %v734
      %789 = vmatprep.subr.bf16.mxu0 0
      %790 = vmatpush1.bf16.msra.mxu0 %v733
      %791 = vmatprep.subr.bf16.mxu0 0
      %792 = vmatpush1.bf16.msra.mxu0 %v732
      %793 = vmatprep.subr.bf16.mxu0 0
      %794 = vmatpush1.bf16.msra.mxu0 %v731
      %795 = vmatprep.subr.bf16.mxu0 0
      %796 = vmatpush2.bf16.msra.mxu0 %v746
      %797 = vmatprep.subr.bf16.mxu0 0
      %798 = vmatpush2.bf16.msra.mxu0 %v745
      %799 = vmatprep.subr.bf16.mxu0 0
      %800 = vmatpush2.bf16.msra.mxu0 %v744
      %801 = vmatprep.subr.bf16.mxu0 0
      %802 = vmatpush2.bf16.msra.mxu0 %v743
      %803 = vmatprep.subr.bf16.mxu0 0
      %804 = vmatpush2.bf16.msra.mxu0 %v742
      %805 = vmatprep.subr.bf16.mxu0 0
      %806 = vmatpush2.bf16.msra.mxu0 %v741
      %807 = vmatprep.subr.bf16.mxu0 0
      %808 = vmatpush2.bf16.msra.mxu0 %v740
      %809 = vmatprep.subr.bf16.mxu0 0
      %810 = vmatpush2.bf16.msra.mxu0 %v739
      %811 = vmatprep.mubr.bf16.mxu0 %v540
      %812 = vmatmul.mubr.bf16.gmra.mxu0 %v539
      %v813 = vpop.f32.mrf.mxu0
      %v814 = vadd.f32 %v377, %v813
      %v815 = vpop.f32.mrf.mxu0
      %v816 = vpop.f32.mrf.mxu0
      %v817 = vadd.f32 %v377, %v816
      %v818 = vpop.f32.mrf.mxu0
      %819 = vmatprep.mubr.bf16.mxu0 %v543
      %820 = vmatmul.mubr.bf16.gmra.mxu0 %v542
      %v821 = vpop.f32.mrf.mxu0
      %v822 = vadd.f32 %v377, %v821
      %v823 = vpop.f32.mrf.mxu0
      %v824 = vpop.f32.mrf.mxu0
      %v825 = vadd.f32 %v377, %v824
      %v826 = vpop.f32.mrf.mxu0
      %827 = vmatprep.mubr.bf16.mxu0 %v546
      %828 = vmatmul.mubr.bf16.gmra.mxu0 %v545
      %v829 = vpop.f32.mrf.mxu0
      %v830 = vadd.f32 %v377, %v829
      %v831 = vpop.f32.mrf.mxu0
      %v832 = vpop.f32.mrf.mxu0
      %v833 = vadd.f32 %v377, %v832
      %v834 = vpop.f32.mrf.mxu0
      %835 = vmatprep.mubr.bf16.mxu0 %v549
      %836 = vmatmul.mubr.bf16.gmra.mxu0 %v548
      %v837 = vpop.f32.mrf.mxu0
      %v838 = vadd.f32 %v377, %v837
      %v839 = vpop.f32.mrf.mxu0
      %v840 = vpop.f32.mrf.mxu0
      %v841 = vadd.f32 %v377, %v840
      %v842 = vpop.f32.mrf.mxu0
      %843 = vmatprep.mubr.bf16.mxu0 %v552
      %844 = vmatmul.mubr.bf16.gmra.mxu0 %v551
      %v845 = vpop.f32.mrf.mxu0
      %v846 = vadd.f32 %v377, %v845
      %v847 = vpop.f32.mrf.mxu0
      %v848 = vpop.f32.mrf.mxu0
      %v849 = vadd.f32 %v377, %v848
      %v850 = vpop.f32.mrf.mxu0
      %851 = vmatprep.mubr.bf16.mxu0 %v555
      %852 = vmatmul.mubr.bf16.gmra.mxu0 %v554
      %v853 = vpop.f32.mrf.mxu0
      %v854 = vadd.f32 %v377, %v853
      %v855 = vpop.f32.mrf.mxu0
      %v856 = vpop.f32.mrf.mxu0
      %v857 = vadd.f32 %v377, %v856
      %v858 = vpop.f32.mrf.mxu0
      %859 = vmatprep.mubr.bf16.mxu0 %v558
      %860 = vmatmul.mubr.bf16.gmra.mxu0 %v557
      %v861 = vpop.f32.mrf.mxu0
      %v862 = vadd.f32 %v377, %v861
      %v863 = vpop.f32.mrf.mxu0
      %v864 = vpop.f32.mrf.mxu0
      %v865 = vadd.f32 %v377, %v864
      %v866 = vpop.f32.mrf.mxu0
      %867 = vmatprep.mubr.bf16.mxu0 %v561
      %868 = vmatmul.mubr.bf16.gmra.mxu0 %v560
      %v869 = vpop.f32.mrf.mxu0
      %v870 = vadd.f32 %v377, %v869
      %v871 = vpop.f32.mrf.mxu0
      %v872 = vpop.f32.mrf.mxu0
      %v873 = vadd.f32 %v377, %v872
      %v874 = vpop.f32.mrf.mxu0
      %875 = vmatprep.mubr.bf16.mxu0 %v564
      %876 = vmatmul.mubr.bf16.gmra.mxu0 %v563
      %v877 = vpop.f32.mrf.mxu0
      %v878 = vadd.f32 %v377, %v877
      %v879 = vpop.f32.mrf.mxu0
      %v880 = vpop.f32.mrf.mxu0
      %v881 = vadd.f32 %v377, %v880
      %v882 = vpop.f32.mrf.mxu0
      %883 = vmatprep.mubr.bf16.mxu0 %v567
      %884 = vmatmul.mubr.bf16.gmra.mxu0 %v566
      %v885 = vpop.f32.mrf.mxu0
      %v886 = vadd.f32 %v377, %v885
      %v887 = vpop.f32.mrf.mxu0
      %v888 = vpop.f32.mrf.mxu0
      %v889 = vadd.f32 %v377, %v888
      %v890 = vpop.f32.mrf.mxu0
      %891 = vmatprep.mubr.bf16.mxu0 %v570
      %892 = vmatmul.mubr.bf16.gmra.mxu0 %v569
      %v893 = vpop.f32.mrf.mxu0
      %v894 = vadd.f32 %v377, %v893
      %v895 = vpop.f32.mrf.mxu0
      %v896 = vpop.f32.mrf.mxu0
      %v897 = vadd.f32 %v377, %v896
      %v898 = vpop.f32.mrf.mxu0
      %899 = vmatprep.mubr.bf16.mxu0 %v573
      %900 = vmatmul.mubr.bf16.gmra.mxu0 %v572
      %v901 = vpop.f32.mrf.mxu0
      %v902 = vadd.f32 %v377, %v901
      %v903 = vpop.f32.mrf.mxu0
      %v904 = vpop.f32.mrf.mxu0
      %v905 = vadd.f32 %v377, %v904
      %v906 = vpop.f32.mrf.mxu0
      %907 = vmatprep.mubr.bf16.mxu0 %v576
      %908 = vmatmul.mubr.bf16.gmra.mxu0 %v575
      %v909 = vpop.f32.mrf.mxu0
      %v910 = vadd.f32 %v377, %v909
      %v911 = vpop.f32.mrf.mxu0
      %v912 = vpop.f32.mrf.mxu0
      %v913 = vadd.f32 %v377, %v912
      %v914 = vpop.f32.mrf.mxu0
      %915 = vmatprep.mubr.bf16.mxu0 %v579
      %916 = vmatmul.mubr.bf16.gmra.mxu0 %v578
      %v917 = vpop.f32.mrf.mxu0
      %v918 = vadd.f32 %v377, %v917
      %v919 = vpop.f32.mrf.mxu0
      %v920 = vpop.f32.mrf.mxu0
      %v921 = vadd.f32 %v377, %v920
      %v922 = vpop.f32.mrf.mxu0
      %923 = vmatprep.mubr.bf16.mxu0 %v582
      %924 = vmatmul.mubr.bf16.gmra.mxu0 %v581
      %v925 = vpop.f32.mrf.mxu0
      %v926 = vadd.f32 %v377, %v925
      %v927 = vpop.f32.mrf.mxu0
      %v928 = vpop.f32.mrf.mxu0
      %v929 = vadd.f32 %v377, %v928
      %v930 = vpop.f32.mrf.mxu0
      %931 = vmatprep.mubr.bf16.mxu0 %v585
      %932 = vmatmul.mubr.bf16.gmra.mxu0 %v584
      %v933 = vpop.f32.mrf.mxu0
      %v934 = vadd.f32 %v377, %v933
      %v935 = vpop.f32.mrf.mxu0
      %v936 = vpop.f32.mrf.mxu0
      %v937 = vadd.f32 %v377, %v936
      %v938 = vpop.f32.mrf.mxu0
      %939 = vdwg.mxu0
      %940 = vmatprep.subr.bf16.mxu0 0
      %941 = vmatpush1.bf16.msra.mxu0 %v754
      %942 = vmatprep.subr.bf16.mxu0 0
      %943 = vmatpush1.bf16.msra.mxu0 %v753
      %944 = vmatprep.subr.bf16.mxu0 0
      %945 = vmatpush1.bf16.msra.mxu0 %v752
      %946 = vmatprep.subr.bf16.mxu0 0
      %947 = vmatpush1.bf16.msra.mxu0 %v751
      %948 = vmatprep.subr.bf16.mxu0 0
      %949 = vmatpush1.bf16.msra.mxu0 %v750
      %950 = vmatprep.subr.bf16.mxu0 0
      %951 = vmatpush1.bf16.msra.mxu0 %v749
      %952 = vmatprep.subr.bf16.mxu0 0
      %953 = vmatpush1.bf16.msra.mxu0 %v748
      %954 = vmatprep.subr.bf16.mxu0 0
      %955 = vmatpush1.bf16.msra.mxu0 %v747
      %956 = vmatprep.subr.bf16.mxu0 0
      %957 = vmatpush2.bf16.msra.mxu0 0
      %958 = vmatprep.subr.bf16.mxu0 0
      %959 = vmatpush2.bf16.msra.mxu0 0
      %960 = vmatprep.subr.bf16.mxu0 0
      %961 = vmatpush2.bf16.msra.mxu0 0
      %962 = vmatprep.subr.bf16.mxu0 0
      %963 = vmatpush2.bf16.msra.mxu0 0
      %964 = vmatprep.subr.bf16.mxu0 0
      %965 = vmatpush2.bf16.msra.mxu0 0
      %966 = vmatprep.subr.bf16.mxu0 0
      %967 = vmatpush2.bf16.msra.mxu0 0
      %968 = vmatprep.subr.bf16.mxu0 0
      %969 = vmatpush2.bf16.msra.mxu0 0
      %970 = vmatprep.subr.bf16.mxu0 0
      %971 = vmatpush2.bf16.msra.mxu0 0
      %972 = vmatprep.mubr.bf16.mxu0 0
      %973 = vmatmul.mubr.bf16.gmra.mxu0 %v541
      %v974 = vpop.f32.mrf.mxu0
      %v975 = vadd.f32 %v814, %v974
      %v976 = vpop.f32.mrf.mxu0
      %v977 = vpop.f32.mrf.mxu0
      %v978 = vadd.f32 %v817, %v977
      %v979 = vpop.f32.mrf.mxu0
      %980 = vmatprep.mubr.bf16.mxu0 0
      %981 = vmatmul.mubr.bf16.gmra.mxu0 %v544
      %v982 = vpop.f32.mrf.mxu0
      %v983 = vadd.f32 %v822, %v982
      %v984 = vpop.f32.mrf.mxu0
      %v985 = vpop.f32.mrf.mxu0
      %v986 = vadd.f32 %v825, %v985
      %v987 = vpop.f32.mrf.mxu0
      %988 = vmatprep.mubr.bf16.mxu0 0
      %989 = vmatmul.mubr.bf16.gmra.mxu0 %v547
      %v990 = vpop.f32.mrf.mxu0
      %v991 = vadd.f32 %v830, %v990
      %v992 = vpop.f32.mrf.mxu0
      %v993 = vpop.f32.mrf.mxu0
      %v994 = vadd.f32 %v833, %v993
      %v995 = vpop.f32.mrf.mxu0
      %996 = vmatprep.mubr.bf16.mxu0 0
      %997 = vmatmul.mubr.bf16.gmra.mxu0 %v550
      %v998 = vpop.f32.mrf.mxu0
      %v999 = vadd.f32 %v838, %v998
      %v1000 = vpop.f32.mrf.mxu0
      %v1001 = vpop.f32.mrf.mxu0
      %v1002 = vadd.f32 %v841, %v1001
      %v1003 = vpop.f32.mrf.mxu0
      %1004 = vmatprep.mubr.bf16.mxu0 0
      %1005 = vmatmul.mubr.bf16.gmra.mxu0 %v553
      %v1006 = vpop.f32.mrf.mxu0
      %v1007 = vadd.f32 %v846, %v1006
      %v1008 = vpop.f32.mrf.mxu0
      %v1009 = vpop.f32.mrf.mxu0
      %v1010 = vadd.f32 %v849, %v1009
      %v1011 = vpop.f32.mrf.mxu0
      %1012 = vmatprep.mubr.bf16.mxu0 0
      %1013 = vmatmul.mubr.bf16.gmra.mxu0 %v556
      %v1014 = vpop.f32.mrf.mxu0
      %v1015 = vadd.f32 %v854, %v1014
      %v1016 = vpop.f32.mrf.mxu0
      %v1017 = vpop.f32.mrf.mxu0
      %v1018 = vadd.f32 %v857, %v1017
      %v1019 = vpop.f32.mrf.mxu0
      %1020 = vmatprep.mubr.bf16.mxu0 0
      %1021 = vmatmul.mubr.bf16.gmra.mxu0 %v559
      %v1022 = vpop.f32.mrf.mxu0
      %v1023 = vadd.f32 %v862, %v1022
      %v1024 = vpop.f32.mrf.mxu0
      %v1025 = vpop.f32.mrf.mxu0
      %v1026 = vadd.f32 %v865, %v1025
      %v1027 = vpop.f32.mrf.mxu0
      %1028 = vmatprep.mubr.bf16.mxu0 0
      %1029 = vmatmul.mubr.bf16.gmra.mxu0 %v562
      %v1030 = vpop.f32.mrf.mxu0
      %v1031 = vadd.f32 %v870, %v1030
      %v1032 = vpop.f32.mrf.mxu0
      %v1033 = vpop.f32.mrf.mxu0
      %v1034 = vadd.f32 %v873, %v1033
      %v1035 = vpop.f32.mrf.mxu0
      %1036 = vmatprep.mubr.bf16.mxu0 0
      %1037 = vmatmul.mubr.bf16.gmra.mxu0 %v565
      %v1038 = vpop.f32.mrf.mxu0
      %v1039 = vadd.f32 %v878, %v1038
      %v1040 = vpop.f32.mrf.mxu0
      %v1041 = vpop.f32.mrf.mxu0
      %v1042 = vadd.f32 %v881, %v1041
      %v1043 = vpop.f32.mrf.mxu0
      %1044 = vmatprep.mubr.bf16.mxu0 0
      %1045 = vmatmul.mubr.bf16.gmra.mxu0 %v568
      %v1046 = vpop.f32.mrf.mxu0
      %v1047 = vadd.f32 %v886, %v1046
      %v1048 = vpop.f32.mrf.mxu0
      %v1049 = vpop.f32.mrf.mxu0
      %v1050 = vadd.f32 %v889, %v1049
      %v1051 = vpop.f32.mrf.mxu0
      %1052 = vmatprep.mubr.bf16.mxu0 0
      %1053 = vmatmul.mubr.bf16.gmra.mxu0 %v571
      %v1054 = vpop.f32.mrf.mxu0
      %v1055 = vadd.f32 %v894, %v1054
      %v1056 = vpop.f32.mrf.mxu0
      %v1057 = vpop.f32.mrf.mxu0
      %v1058 = vadd.f32 %v897, %v1057
      %v1059 = vpop.f32.mrf.mxu0
      %1060 = vmatprep.mubr.bf16.mxu0 0
      %1061 = vmatmul.mubr.bf16.gmra.mxu0 %v574
      %v1062 = vpop.f32.mrf.mxu0
      %v1063 = vadd.f32 %v902, %v1062
      %v1064 = vpop.f32.mrf.mxu0
      %v1065 = vpop.f32.mrf.mxu0
      %v1066 = vadd.f32 %v905, %v1065
      %v1067 = vpop.f32.mrf.mxu0
      %1068 = vmatprep.mubr.bf16.mxu0 0
      %1069 = vmatmul.mubr.bf16.gmra.mxu0 %v577
      %v1070 = vpop.f32.mrf.mxu0
      %v1071 = vadd.f32 %v910, %v1070
      %v1072 = vpop.f32.mrf.mxu0
      %v1073 = vpop.f32.mrf.mxu0
      %v1074 = vadd.f32 %v913, %v1073
      %v1075 = vpop.f32.mrf.mxu0
      %1076 = vmatprep.mubr.bf16.mxu0 0
      %1077 = vmatmul.mubr.bf16.gmra.mxu0 %v580
      %v1078 = vpop.f32.mrf.mxu0
      %v1079 = vadd.f32 %v918, %v1078
      %v1080 = vpop.f32.mrf.mxu0
      %v1081 = vpop.f32.mrf.mxu0
      %v1082 = vadd.f32 %v921, %v1081
      %v1083 = vpop.f32.mrf.mxu0
      %1084 = vmatprep.mubr.bf16.mxu0 0
      %1085 = vmatmul.mubr.bf16.gmra.mxu0 %v583
      %v1086 = vpop.f32.mrf.mxu0
      %v1087 = vadd.f32 %v926, %v1086
      %v1088 = vpop.f32.mrf.mxu0
      %v1089 = vpop.f32.mrf.mxu0
      %v1090 = vadd.f32 %v929, %v1089
      %v1091 = vpop.f32.mrf.mxu0
      %1092 = vmatprep.mubr.bf16.mxu0 0
      %1093 = vmatmul.mubr.bf16.gmra.mxu0 %v586
      %v1094 = vpop.f32.mrf.mxu0
      %v1095 = vadd.f32 %v934, %v1094
      %v1096 = vpop.f32.mrf.mxu0
      %v1097 = vpop.f32.mrf.mxu0
      %v1098 = vadd.f32 %v937, %v1097
      %v1099 = vpop.f32.mrf.mxu0
      %1100 = vdwg.mxu0
      %v1101 = vmul.f32 %v975, %v975
      %v1102 = vmul.f32 %v978, %v978
      %v1103 = vmul.f32 %v983, %v983
      %v1104 = vmul.f32 %v986, %v986
      %v1105 = vmul.f32 %v991, %v991
      %v1106 = vmul.f32 %v994, %v994
      %v1107 = vmul.f32 %v999, %v999
      %v1108 = vmul.f32 %v1002, %v1002
      %v1109 = vmul.f32 %v1007, %v1007
      %v1110 = vmul.f32 %v1010, %v1010
      %v1111 = vmul.f32 %v1015, %v1015
      %v1112 = vmul.f32 %v1018, %v1018
      %v1113 = vmul.f32 %v1023, %v1023
      %v1114 = vmul.f32 %v1026, %v1026
      %v1115 = vmul.f32 %v1031, %v1031
      %v1116 = vmul.f32 %v1034, %v1034
      %v1117 = vmul.f32 %v1039, %v1039
      %v1118 = vmul.f32 %v1042, %v1042
      %v1119 = vmul.f32 %v1047, %v1047
      %v1120 = vmul.f32 %v1050, %v1050
      %v1121 = vmul.f32 %v1055, %v1055
      %v1122 = vmul.f32 %v1058, %v1058
      %v1123 = vmul.f32 %v1063, %v1063
      %v1124 = vmul.f32 %v1066, %v1066
      %v1125 = vmul.f32 %v1071, %v1071
      %v1126 = vmul.f32 %v1074, %v1074
      %v1127 = vmul.f32 %v1079, %v1079
      %v1128 = vmul.f32 %v1082, %v1082
      %v1129 = vmul.f32 %v1087, %v1087
      %v1130 = vmul.f32 %v1090, %v1090
      %v1131 = vmul.f32 %v1095, %v1095
      %v1132 = vmul.f32 %v1098, %v1098
      %v1133 = vpack.c.bf16 %v1102, %v1101
      %v1134 = vpack.c.bf16 %v1104, %v1103
      %v1135 = vpack.c.bf16 %v1106, %v1105
      %v1136 = vpack.c.bf16 %v1108, %v1107
      %v1137 = vpack.c.bf16 %v1110, %v1109
      %v1138 = vpack.c.bf16 %v1112, %v1111
      %v1139 = vpack.c.bf16 %v1114, %v1113
      %v1140 = vpack.c.bf16 %v1116, %v1115
      %v1141 = vpack.c.bf16 %v1118, %v1117
      %v1142 = vpack.c.bf16 %v1120, %v1119
      %v1143 = vpack.c.bf16 %v1122, %v1121
      %v1144 = vpack.c.bf16 %v1124, %v1123
      %v1145 = vpack.c.bf16 %v1126, %v1125
      %v1146 = vpack.c.bf16 %v1128, %v1127
      %v1147 = vpack.c.bf16 %v1130, %v1129
      %v1148 = vpack.c.bf16 %v1132, %v1131
      %v1149 = vld [vmem:[%s3] sm:$0xf]
      %v1150 = vld [vmem:[%s3 + $0x4] sm:$0xf]
      %v1151 = vld [vmem:[%s3 + $0x8] sm:$0xf]
      %v1152 = vld [vmem:[%s3 + $0xc] sm:$0xf]
      %v1153 = vld [vmem:[%s3 + $0x10] sm:$0xf]
      %v1154 = vld [vmem:[%s3 + $0x14] sm:$0xf]
      %v1155 = vld [vmem:[%s3 + $0x18] sm:$0xf]
      %v1156 = vld [vmem:[%s3 + $0x1c] sm:$0xf]
      %v1157 = vld [vmem:[%s3 + $0x20] sm:$0xf]
      %v1158 = vld [vmem:[%s3 + $0x24] sm:$0xf]
      %v1159 = vld [vmem:[%s3 + $0x28] sm:$0xf]
      %v1160 = vld [vmem:[%s3 + $0x2c] sm:$0xf]
      %v1161 = vld [vmem:[%s3 + $0x30] sm:$0xf]
      %v1162 = vld [vmem:[%s3 + $0x34] sm:$0xf]
      %v1163 = vld [vmem:[%s3 + $0x38] sm:$0xf]
      %v1164 = vld [vmem:[%s3 + $0x3c] sm:$0xf]
      %v1165 = vld [vmem:[%s4] sm:$0x1]
      %v1167 = vlaneseq
      %v1168 = vshrl.u32 %v1167, 7
      %v1169 = vsub.s32 0, %v1168
      %v1170 = vrot.slane %v1165, %v1169
      %v1188 = vunpack.c.l.b16 %v1149
      %v1189 = vunpack.c.l.b16 %v1150
      %v1190 = vunpack.c.l.b16 %v1151
      %v1191 = vunpack.c.l.b16 %v1152
      %v1192 = vunpack.c.l.b16 %v1153
      %v1193 = vunpack.c.l.b16 %v1154
      %v1194 = vunpack.c.l.b16 %v1155
      %v1195 = vunpack.c.l.b16 %v1156
      %v1196 = vunpack.c.l.b16 %v1157
      %v1197 = vunpack.c.l.b16 %v1158
      %v1198 = vunpack.c.l.b16 %v1159
      %v1199 = vunpack.c.l.b16 %v1160
      %v1200 = vunpack.c.l.b16 %v1161
      %v1201 = vunpack.c.l.b16 %v1162
      %v1202 = vunpack.c.l.b16 %v1163
      %v1203 = vunpack.c.l.b16 %v1164
      %v1204 = vpack.c.b16 %v1189, %v1188
      %v1205 = vpack.c.b16 %v1191, %v1190
      %v1206 = vpack.c.b16 %v1193, %v1192
      %v1207 = vpack.c.b16 %v1195, %v1194
      %v1208 = vpack.c.b16 %v1197, %v1196
      %v1209 = vpack.c.b16 %v1199, %v1198
      %v1210 = vpack.c.b16 %v1201, %v1200
      %v1211 = vpack.c.b16 %v1203, %v1202
      %1220 = vmatprep.subr.bf16.mxu0 0
      %1221 = vmatpush1.bf16.msra.mxu0 %v1211
      %1222 = vmatprep.subr.bf16.mxu0 0
      %1223 = vmatpush1.bf16.msra.mxu0 %v1210
      %1224 = vmatprep.subr.bf16.mxu0 0
      %1225 = vmatpush1.bf16.msra.mxu0 %v1209
      %1226 = vmatprep.subr.bf16.mxu0 0
      %1227 = vmatpush1.bf16.msra.mxu0 %v1208
      %1228 = vmatprep.subr.bf16.mxu0 0
      %1229 = vmatpush1.bf16.msra.mxu0 %v1207
      %1230 = vmatprep.subr.bf16.mxu0 0
      %1231 = vmatpush1.bf16.msra.mxu0 %v1206
      %1232 = vmatprep.subr.bf16.mxu0 0
      %1233 = vmatpush1.bf16.msra.mxu0 %v1205
      %1234 = vmatprep.subr.bf16.mxu0 0
      %1235 = vmatpush1.bf16.msra.mxu0 %v1204
      %1236 = vmatprep.subr.bf16.mxu0 0
      %1237 = vmatpush2.bf16.msra.mxu0 0
      %1238 = vmatprep.subr.bf16.mxu0 0
      %1239 = vmatpush2.bf16.msra.mxu0 0
      %1240 = vmatprep.subr.bf16.mxu0 0
      %1241 = vmatpush2.bf16.msra.mxu0 0
      %1242 = vmatprep.subr.bf16.mxu0 0
      %1243 = vmatpush2.bf16.msra.mxu0 0
      %1244 = vmatprep.subr.bf16.mxu0 0
      %1245 = vmatpush2.bf16.msra.mxu0 0
      %1246 = vmatprep.subr.bf16.mxu0 0
      %1247 = vmatpush2.bf16.msra.mxu0 0
      %1248 = vmatprep.subr.bf16.mxu0 0
      %1249 = vmatpush2.bf16.msra.mxu0 0
      %1250 = vmatprep.subr.bf16.mxu0 0
      %1251 = vmatpush2.bf16.msra.mxu0 0
      %1252 = vmatprep.mubr.bf16.mxu0 0
      %1253 = vmatmul.mubr.bf16.gmra.mxu0 %v1133
      %v1254 = vpop.f32.mrf.mxu0
      %v1255 = vadd.f32 %v1170, %v1254
      %v1256 = vpop.f32.mrf.mxu0
      %v1257 = vpop.f32.mrf.mxu0
      %v1258 = vadd.f32 %v1170, %v1257
      %v1259 = vpop.f32.mrf.mxu0
      %1260 = vmatprep.mubr.bf16.mxu0 0
      %1261 = vmatmul.mubr.bf16.gmra.mxu0 %v1134
      %v1262 = vpop.f32.mrf.mxu0
      %v1263 = vadd.f32 %v1170, %v1262
      %v1264 = vpop.f32.mrf.mxu0
      %v1265 = vpop.f32.mrf.mxu0
      %v1266 = vadd.f32 %v1170, %v1265
      %v1267 = vpop.f32.mrf.mxu0
      %1268 = vmatprep.mubr.bf16.mxu0 0
      %1269 = vmatmul.mubr.bf16.gmra.mxu0 %v1135
      %v1270 = vpop.f32.mrf.mxu0
      %v1271 = vadd.f32 %v1170, %v1270
      %v1272 = vpop.f32.mrf.mxu0
      %v1273 = vpop.f32.mrf.mxu0
      %v1274 = vadd.f32 %v1170, %v1273
      %v1275 = vpop.f32.mrf.mxu0
      %1276 = vmatprep.mubr.bf16.mxu0 0
      %1277 = vmatmul.mubr.bf16.gmra.mxu0 %v1136
      %v1278 = vpop.f32.mrf.mxu0
      %v1279 = vadd.f32 %v1170, %v1278
      %v1280 = vpop.f32.mrf.mxu0
      %v1281 = vpop.f32.mrf.mxu0
      %v1282 = vadd.f32 %v1170, %v1281
      %v1283 = vpop.f32.mrf.mxu0
      %1284 = vmatprep.mubr.bf16.mxu0 0
      %1285 = vmatmul.mubr.bf16.gmra.mxu0 %v1137
      %v1286 = vpop.f32.mrf.mxu0
      %v1287 = vadd.f32 %v1170, %v1286
      %v1288 = vpop.f32.mrf.mxu0
      %v1289 = vpop.f32.mrf.mxu0
      %v1290 = vadd.f32 %v1170, %v1289
      %v1291 = vpop.f32.mrf.mxu0
      %1292 = vmatprep.mubr.bf16.mxu0 0
      %1293 = vmatmul.mubr.bf16.gmra.mxu0 %v1138
      %v1294 = vpop.f32.mrf.mxu0
      %v1295 = vadd.f32 %v1170, %v1294
      %v1296 = vpop.f32.mrf.mxu0
      %v1297 = vpop.f32.mrf.mxu0
      %v1298 = vadd.f32 %v1170, %v1297
      %v1299 = vpop.f32.mrf.mxu0
      %1300 = vmatprep.mubr.bf16.mxu0 0
      %1301 = vmatmul.mubr.bf16.gmra.mxu0 %v1139
      %v1302 = vpop.f32.mrf.mxu0
      %v1303 = vadd.f32 %v1170, %v1302
      %v1304 = vpop.f32.mrf.mxu0
      %v1305 = vpop.f32.mrf.mxu0
      %v1306 = vadd.f32 %v1170, %v1305
      %v1307 = vpop.f32.mrf.mxu0
      %1308 = vmatprep.mubr.bf16.mxu0 0
      %1309 = vmatmul.mubr.bf16.gmra.mxu0 %v1140
      %v1310 = vpop.f32.mrf.mxu0
      %v1311 = vadd.f32 %v1170, %v1310
      %v1312 = vpop.f32.mrf.mxu0
      %v1313 = vpop.f32.mrf.mxu0
      %v1314 = vadd.f32 %v1170, %v1313
      %v1315 = vpop.f32.mrf.mxu0
      %1316 = vmatprep.mubr.bf16.mxu0 0
      %1317 = vmatmul.mubr.bf16.gmra.mxu0 %v1141
      %v1318 = vpop.f32.mrf.mxu0
      %v1319 = vadd.f32 %v1170, %v1318
      %v1320 = vpop.f32.mrf.mxu0
      %v1321 = vpop.f32.mrf.mxu0
      %v1322 = vadd.f32 %v1170, %v1321
      %v1323 = vpop.f32.mrf.mxu0
      %1324 = vmatprep.mubr.bf16.mxu0 0
      %1325 = vmatmul.mubr.bf16.gmra.mxu0 %v1142
      %v1326 = vpop.f32.mrf.mxu0
      %v1327 = vadd.f32 %v1170, %v1326
      %v1328 = vpop.f32.mrf.mxu0
      %v1329 = vpop.f32.mrf.mxu0
      %v1330 = vadd.f32 %v1170, %v1329
      %v1331 = vpop.f32.mrf.mxu0
      %1332 = vmatprep.mubr.bf16.mxu0 0
      %1333 = vmatmul.mubr.bf16.gmra.mxu0 %v1143
      %v1334 = vpop.f32.mrf.mxu0
      %v1335 = vadd.f32 %v1170, %v1334
      %v1336 = vpop.f32.mrf.mxu0
      %v1337 = vpop.f32.mrf.mxu0
      %v1338 = vadd.f32 %v1170, %v1337
      %v1339 = vpop.f32.mrf.mxu0
      %1340 = vmatprep.mubr.bf16.mxu0 0
      %1341 = vmatmul.mubr.bf16.gmra.mxu0 %v1144
      %v1342 = vpop.f32.mrf.mxu0
      %v1343 = vadd.f32 %v1170, %v1342
      %v1344 = vpop.f32.mrf.mxu0
      %v1345 = vpop.f32.mrf.mxu0
      %v1346 = vadd.f32 %v1170, %v1345
      %v1347 = vpop.f32.mrf.mxu0
      %1348 = vmatprep.mubr.bf16.mxu0 0
      %1349 = vmatmul.mubr.bf16.gmra.mxu0 %v1145
      %v1350 = vpop.f32.mrf.mxu0
      %v1351 = vadd.f32 %v1170, %v1350
      %v1352 = vpop.f32.mrf.mxu0
      %v1353 = vpop.f32.mrf.mxu0
      %v1354 = vadd.f32 %v1170, %v1353
      %v1355 = vpop.f32.mrf.mxu0
      %1356 = vmatprep.mubr.bf16.mxu0 0
      %1357 = vmatmul.mubr.bf16.gmra.mxu0 %v1146
      %v1358 = vpop.f32.mrf.mxu0
      %v1359 = vadd.f32 %v1170, %v1358
      %v1360 = vpop.f32.mrf.mxu0
      %v1361 = vpop.f32.mrf.mxu0
      %v1362 = vadd.f32 %v1170, %v1361
      %v1363 = vpop.f32.mrf.mxu0
      %1364 = vmatprep.mubr.bf16.mxu0 0
      %1365 = vmatmul.mubr.bf16.gmra.mxu0 %v1147
      %v1366 = vpop.f32.mrf.mxu0
      %v1367 = vadd.f32 %v1170, %v1366
      %v1368 = vpop.f32.mrf.mxu0
      %v1369 = vpop.f32.mrf.mxu0
      %v1370 = vadd.f32 %v1170, %v1369
      %v1371 = vpop.f32.mrf.mxu0
      %1372 = vmatprep.mubr.bf16.mxu0 0
      %1373 = vmatmul.mubr.bf16.gmra.mxu0 %v1148
      %v1374 = vpop.f32.mrf.mxu0
      %v1375 = vadd.f32 %v1170, %v1374
      %v1376 = vpop.f32.mrf.mxu0
      %v1377 = vpop.f32.mrf.mxu0
      %v1378 = vadd.f32 %v1170, %v1377
      %v1379 = vpop.f32.mrf.mxu0
      %1380 = vdwg.mxu0
      %v1381 = vrsqrt.pop %v1255
      %v1382 = vmul.f32 %v1255, %v1381
      %vm1383 = vcmp.eq.f32.partialorder %v1255, inf
      %v1384 = vsel %vm1383, %v1255, %v1382
      %vm1385 = vcmp.eq.f32.partialorder %v1255, 0.0
      %v1386 = vand.u32 %v1255, 2147483648
      %v1387 = vsel %vm1385, %v1386, %v1384
      %v1388 = vrsqrt.pop %v1258
      %v1389 = vmul.f32 %v1258, %v1388
      %vm1390 = vcmp.eq.f32.partialorder %v1258, inf
      %v1391 = vsel %vm1390, %v1258, %v1389
      %vm1392 = vcmp.eq.f32.partialorder %v1258, 0.0
      %v1393 = vand.u32 %v1258, 2147483648
      %v1394 = vsel %vm1392, %v1393, %v1391
      %v1395 = vrsqrt.pop %v1263
      %v1396 = vmul.f32 %v1263, %v1395
      %vm1397 = vcmp.eq.f32.partialorder %v1263, inf
      %v1398 = vsel %vm1397, %v1263, %v1396
      %vm1399 = vcmp.eq.f32.partialorder %v1263, 0.0
      %v1400 = vand.u32 %v1263, 2147483648
      %v1401 = vsel %vm1399, %v1400, %v1398
      %v1402 = vrsqrt.pop %v1266
      %v1403 = vmul.f32 %v1266, %v1402
      %vm1404 = vcmp.eq.f32.partialorder %v1266, inf
      %v1405 = vsel %vm1404, %v1266, %v1403
      %vm1406 = vcmp.eq.f32.partialorder %v1266, 0.0
      %v1407 = vand.u32 %v1266, 2147483648
      %v1408 = vsel %vm1406, %v1407, %v1405
      %v1409 = vrsqrt.pop %v1271
      %v1410 = vmul.f32 %v1271, %v1409
      %vm1411 = vcmp.eq.f32.partialorder %v1271, inf
      %v1412 = vsel %vm1411, %v1271, %v1410
      %vm1413 = vcmp.eq.f32.partialorder %v1271, 0.0
      %v1414 = vand.u32 %v1271, 2147483648
      %v1415 = vsel %vm1413, %v1414, %v1412
      %v1416 = vrsqrt.pop %v1274
      %v1417 = vmul.f32 %v1274, %v1416
      %vm1418 = vcmp.eq.f32.partialorder %v1274, inf
      %v1419 = vsel %vm1418, %v1274, %v1417
      %vm1420 = vcmp.eq.f32.partialorder %v1274, 0.0
      %v1421 = vand.u32 %v1274, 2147483648
      %v1422 = vsel %vm1420, %v1421, %v1419
      %v1423 = vrsqrt.pop %v1279
      %v1424 = vmul.f32 %v1279, %v1423
      %vm1425 = vcmp.eq.f32.partialorder %v1279, inf
      %v1426 = vsel %vm1425, %v1279, %v1424
      %vm1427 = vcmp.eq.f32.partialorder %v1279, 0.0
      %v1428 = vand.u32 %v1279, 2147483648
      %v1429 = vsel %vm1427, %v1428, %v1426
      %v1430 = vrsqrt.pop %v1282
      %v1431 = vmul.f32 %v1282, %v1430
      %vm1432 = vcmp.eq.f32.partialorder %v1282, inf
      %v1433 = vsel %vm1432, %v1282, %v1431
      %vm1434 = vcmp.eq.f32.partialorder %v1282, 0.0
      %v1435 = vand.u32 %v1282, 2147483648
      %v1436 = vsel %vm1434, %v1435, %v1433
      %v1437 = vrsqrt.pop %v1287
      %v1438 = vmul.f32 %v1287, %v1437
      %vm1439 = vcmp.eq.f32.partialorder %v1287, inf
      %v1440 = vsel %vm1439, %v1287, %v1438
      %vm1441 = vcmp.eq.f32.partialorder %v1287, 0.0
      %v1442 = vand.u32 %v1287, 2147483648
      %v1443 = vsel %vm1441, %v1442, %v1440
      %v1444 = vrsqrt.pop %v1290
      %v1445 = vmul.f32 %v1290, %v1444
      %vm1446 = vcmp.eq.f32.partialorder %v1290, inf
      %v1447 = vsel %vm1446, %v1290, %v1445
      %vm1448 = vcmp.eq.f32.partialorder %v1290, 0.0
      %v1449 = vand.u32 %v1290, 2147483648
      %v1450 = vsel %vm1448, %v1449, %v1447
      %v1451 = vrsqrt.pop %v1295
      %v1452 = vmul.f32 %v1295, %v1451
      %vm1453 = vcmp.eq.f32.partialorder %v1295, inf
      %v1454 = vsel %vm1453, %v1295, %v1452
      %vm1455 = vcmp.eq.f32.partialorder %v1295, 0.0
      %v1456 = vand.u32 %v1295, 2147483648
      %v1457 = vsel %vm1455, %v1456, %v1454
      %v1458 = vrsqrt.pop %v1298
      %v1459 = vmul.f32 %v1298, %v1458
      %vm1460 = vcmp.eq.f32.partialorder %v1298, inf
      %v1461 = vsel %vm1460, %v1298, %v1459
      %vm1462 = vcmp.eq.f32.partialorder %v1298, 0.0
      %v1463 = vand.u32 %v1298, 2147483648
      %v1464 = vsel %vm1462, %v1463, %v1461
      %v1465 = vrsqrt.pop %v1303
      %v1466 = vmul.f32 %v1303, %v1465
      %vm1467 = vcmp.eq.f32.partialorder %v1303, inf
      %v1468 = vsel %vm1467, %v1303, %v1466
      %vm1469 = vcmp.eq.f32.partialorder %v1303, 0.0
      %v1470 = vand.u32 %v1303, 2147483648
      %v1471 = vsel %vm1469, %v1470, %v1468
      %v1472 = vrsqrt.pop %v1306
      %v1473 = vmul.f32 %v1306, %v1472
      %vm1474 = vcmp.eq.f32.partialorder %v1306, inf
      %v1475 = vsel %vm1474, %v1306, %v1473
      %vm1476 = vcmp.eq.f32.partialorder %v1306, 0.0
      %v1477 = vand.u32 %v1306, 2147483648
      %v1478 = vsel %vm1476, %v1477, %v1475
      %v1479 = vrsqrt.pop %v1311
      %v1480 = vmul.f32 %v1311, %v1479
      %vm1481 = vcmp.eq.f32.partialorder %v1311, inf
      %v1482 = vsel %vm1481, %v1311, %v1480
      %vm1483 = vcmp.eq.f32.partialorder %v1311, 0.0
      %v1484 = vand.u32 %v1311, 2147483648
      %v1485 = vsel %vm1483, %v1484, %v1482
      %v1486 = vrsqrt.pop %v1314
      %v1487 = vmul.f32 %v1314, %v1486
      %vm1488 = vcmp.eq.f32.partialorder %v1314, inf
      %v1489 = vsel %vm1488, %v1314, %v1487
      %vm1490 = vcmp.eq.f32.partialorder %v1314, 0.0
      %v1491 = vand.u32 %v1314, 2147483648
      %v1492 = vsel %vm1490, %v1491, %v1489
      %v1493 = vrsqrt.pop %v1319
      %v1494 = vmul.f32 %v1319, %v1493
      %vm1495 = vcmp.eq.f32.partialorder %v1319, inf
      %v1496 = vsel %vm1495, %v1319, %v1494
      %vm1497 = vcmp.eq.f32.partialorder %v1319, 0.0
      %v1498 = vand.u32 %v1319, 2147483648
      %v1499 = vsel %vm1497, %v1498, %v1496
      %v1500 = vrsqrt.pop %v1322
      %v1501 = vmul.f32 %v1322, %v1500
      %vm1502 = vcmp.eq.f32.partialorder %v1322, inf
      %v1503 = vsel %vm1502, %v1322, %v1501
      %vm1504 = vcmp.eq.f32.partialorder %v1322, 0.0
      %v1505 = vand.u32 %v1322, 2147483648
      %v1506 = vsel %vm1504, %v1505, %v1503
      %v1507 = vrsqrt.pop %v1327
      %v1508 = vmul.f32 %v1327, %v1507
      %vm1509 = vcmp.eq.f32.partialorder %v1327, inf
      %v1510 = vsel %vm1509, %v1327, %v1508
      %vm1511 = vcmp.eq.f32.partialorder %v1327, 0.0
      %v1512 = vand.u32 %v1327, 2147483648
      %v1513 = vsel %vm1511, %v1512, %v1510
      %v1514 = vrsqrt.pop %v1330
      %v1515 = vmul.f32 %v1330, %v1514
      %vm1516 = vcmp.eq.f32.partialorder %v1330, inf
      %v1517 = vsel %vm1516, %v1330, %v1515
      %vm1518 = vcmp.eq.f32.partialorder %v1330, 0.0
      %v1519 = vand.u32 %v1330, 2147483648
      %v1520 = vsel %vm1518, %v1519, %v1517
      %v1521 = vrsqrt.pop %v1335
      %v1522 = vmul.f32 %v1335, %v1521
      %vm1523 = vcmp.eq.f32.partialorder %v1335, inf
      %v1524 = vsel %vm1523, %v1335, %v1522
      %vm1525 = vcmp.eq.f32.partialorder %v1335, 0.0
      %v1526 = vand.u32 %v1335, 2147483648
      %v1527 = vsel %vm1525, %v1526, %v1524
      %v1528 = vrsqrt.pop %v1338
      %v1529 = vmul.f32 %v1338, %v1528
      %vm1530 = vcmp.eq.f32.partialorder %v1338, inf
      %v1531 = vsel %vm1530, %v1338, %v1529
      %vm1532 = vcmp.eq.f32.partialorder %v1338, 0.0
      %v1533 = vand.u32 %v1338, 2147483648
      %v1534 = vsel %vm1532, %v1533, %v1531
      %v1535 = vrsqrt.pop %v1343
      %v1536 = vmul.f32 %v1343, %v1535
      %vm1537 = vcmp.eq.f32.partialorder %v1343, inf
      %v1538 = vsel %vm1537, %v1343, %v1536
      %vm1539 = vcmp.eq.f32.partialorder %v1343, 0.0
      %v1540 = vand.u32 %v1343, 2147483648
      %v1541 = vsel %vm1539, %v1540, %v1538
      %v1542 = vrsqrt.pop %v1346
      %v1543 = vmul.f32 %v1346, %v1542
      %vm1544 = vcmp.eq.f32.partialorder %v1346, inf
      %v1545 = vsel %vm1544, %v1346, %v1543
      %vm1546 = vcmp.eq.f32.partialorder %v1346, 0.0
      %v1547 = vand.u32 %v1346, 2147483648
      %v1548 = vsel %vm1546, %v1547, %v1545
      %v1549 = vrsqrt.pop %v1351
      %v1550 = vmul.f32 %v1351, %v1549
      %vm1551 = vcmp.eq.f32.partialorder %v1351, inf
      %v1552 = vsel %vm1551, %v1351, %v1550
      %vm1553 = vcmp.eq.f32.partialorder %v1351, 0.0
      %v1554 = vand.u32 %v1351, 2147483648
      %v1555 = vsel %vm1553, %v1554, %v1552
      %v1556 = vrsqrt.pop %v1354
      %v1557 = vmul.f32 %v1354, %v1556
      %vm1558 = vcmp.eq.f32.partialorder %v1354, inf
      %v1559 = vsel %vm1558, %v1354, %v1557
      %vm1560 = vcmp.eq.f32.partialorder %v1354, 0.0
      %v1561 = vand.u32 %v1354, 2147483648
      %v1562 = vsel %vm1560, %v1561, %v1559
      %v1563 = vrsqrt.pop %v1359
      %v1564 = vmul.f32 %v1359, %v1563
      %vm1565 = vcmp.eq.f32.partialorder %v1359, inf
      %v1566 = vsel %vm1565, %v1359, %v1564
      %vm1567 = vcmp.eq.f32.partialorder %v1359, 0.0
      %v1568 = vand.u32 %v1359, 2147483648
      %v1569 = vsel %vm1567, %v1568, %v1566
      %v1570 = vrsqrt.pop %v1362
      %v1571 = vmul.f32 %v1362, %v1570
      %vm1572 = vcmp.eq.f32.partialorder %v1362, inf
      %v1573 = vsel %vm1572, %v1362, %v1571
      %vm1574 = vcmp.eq.f32.partialorder %v1362, 0.0
      %v1575 = vand.u32 %v1362, 2147483648
      %v1576 = vsel %vm1574, %v1575, %v1573
      %v1577 = vrsqrt.pop %v1367
      %v1578 = vmul.f32 %v1367, %v1577
      %vm1579 = vcmp.eq.f32.partialorder %v1367, inf
      %v1580 = vsel %vm1579, %v1367, %v1578
      %vm1581 = vcmp.eq.f32.partialorder %v1367, 0.0
      %v1582 = vand.u32 %v1367, 2147483648
      %v1583 = vsel %vm1581, %v1582, %v1580
      %v1584 = vrsqrt.pop %v1370
      %v1585 = vmul.f32 %v1370, %v1584
      %vm1586 = vcmp.eq.f32.partialorder %v1370, inf
      %v1587 = vsel %vm1586, %v1370, %v1585
      %vm1588 = vcmp.eq.f32.partialorder %v1370, 0.0
      %v1589 = vand.u32 %v1370, 2147483648
      %v1590 = vsel %vm1588, %v1589, %v1587
      %v1591 = vrsqrt.pop %v1375
      %v1592 = vmul.f32 %v1375, %v1591
      %vm1593 = vcmp.eq.f32.partialorder %v1375, inf
      %v1594 = vsel %vm1593, %v1375, %v1592
      %vm1595 = vcmp.eq.f32.partialorder %v1375, 0.0
      %v1596 = vand.u32 %v1375, 2147483648
      %v1597 = vsel %vm1595, %v1596, %v1594
      %v1598 = vrsqrt.pop %v1378
      %v1599 = vmul.f32 %v1378, %v1598
      %vm1600 = vcmp.eq.f32.partialorder %v1378, inf
      %v1601 = vsel %vm1600, %v1378, %v1599
      %vm1602 = vcmp.eq.f32.partialorder %v1378, 0.0
      %v1603 = vand.u32 %v1378, 2147483648
      %v1604 = vsel %vm1602, %v1603, %v1601
      %v1605 = vmul.f32 %v975, %v1387
      %v1606 = vmul.f32 %v978, %v1394
      %v1607 = vmul.f32 %v983, %v1401
      %v1608 = vmul.f32 %v986, %v1408
      %v1609 = vmul.f32 %v991, %v1415
      %v1610 = vmul.f32 %v994, %v1422
      %v1611 = vmul.f32 %v999, %v1429
      %v1612 = vmul.f32 %v1002, %v1436
      %v1613 = vmul.f32 %v1007, %v1443
      %v1614 = vmul.f32 %v1010, %v1450
      %v1615 = vmul.f32 %v1015, %v1457
      %v1616 = vmul.f32 %v1018, %v1464
      %v1617 = vmul.f32 %v1023, %v1471
      %v1618 = vmul.f32 %v1026, %v1478
      %v1619 = vmul.f32 %v1031, %v1485
      %v1620 = vmul.f32 %v1034, %v1492
      %v1621 = vmul.f32 %v1039, %v1499
      %v1622 = vmul.f32 %v1042, %v1506
      %v1623 = vmul.f32 %v1047, %v1513
      %v1624 = vmul.f32 %v1050, %v1520
      %v1625 = vmul.f32 %v1055, %v1527
      %v1626 = vmul.f32 %v1058, %v1534
      %v1627 = vmul.f32 %v1063, %v1541
      %v1628 = vmul.f32 %v1066, %v1548
      %v1629 = vmul.f32 %v1071, %v1555
      %v1630 = vmul.f32 %v1074, %v1562
      %v1631 = vmul.f32 %v1079, %v1569
      %v1632 = vmul.f32 %v1082, %v1576
      %v1633 = vmul.f32 %v1087, %v1583
      %v1634 = vmul.f32 %v1090, %v1590
      %v1635 = vmul.f32 %v1095, %v1597
      %v1636 = vmul.f32 %v1098, %v1604
      %s1637 = sld [smem:[#allocation2]]
      %vm1638 = vcmp.ge.f32.partialorder %v1605, 0.0
      %vm1639 = vcmp.ge.f32.partialorder %v1606, 0.0
      %vm1640 = vcmp.ge.f32.partialorder %v1607, 0.0
      %vm1641 = vcmp.ge.f32.partialorder %v1608, 0.0
      %vm1642 = vcmp.ge.f32.partialorder %v1609, 0.0
      %vm1643 = vcmp.ge.f32.partialorder %v1610, 0.0
      %vm1644 = vcmp.ge.f32.partialorder %v1611, 0.0
      %vm1645 = vcmp.ge.f32.partialorder %v1612, 0.0
      %vm1646 = vcmp.ge.f32.partialorder %v1613, 0.0
      %vm1647 = vcmp.ge.f32.partialorder %v1614, 0.0
      %vm1648 = vcmp.ge.f32.partialorder %v1615, 0.0
      %vm1649 = vcmp.ge.f32.partialorder %v1616, 0.0
      %vm1650 = vcmp.ge.f32.partialorder %v1617, 0.0
      %vm1651 = vcmp.ge.f32.partialorder %v1618, 0.0
      %vm1652 = vcmp.ge.f32.partialorder %v1619, 0.0
      %vm1653 = vcmp.ge.f32.partialorder %v1620, 0.0
      %vm1654 = vcmp.ge.f32.partialorder %v1621, 0.0
      %vm1655 = vcmp.ge.f32.partialorder %v1622, 0.0
      %vm1656 = vcmp.ge.f32.partialorder %v1623, 0.0
      %vm1657 = vcmp.ge.f32.partialorder %v1624, 0.0
      %vm1658 = vcmp.ge.f32.partialorder %v1625, 0.0
      %vm1659 = vcmp.ge.f32.partialorder %v1626, 0.0
      %vm1660 = vcmp.ge.f32.partialorder %v1627, 0.0
      %vm1661 = vcmp.ge.f32.partialorder %v1628, 0.0
      %vm1662 = vcmp.ge.f32.partialorder %v1629, 0.0
      %vm1663 = vcmp.ge.f32.partialorder %v1630, 0.0
      %vm1664 = vcmp.ge.f32.partialorder %v1631, 0.0
      %vm1665 = vcmp.ge.f32.partialorder %v1632, 0.0
      %vm1666 = vcmp.ge.f32.partialorder %v1633, 0.0
      %vm1667 = vcmp.ge.f32.partialorder %v1634, 0.0
      %vm1668 = vcmp.ge.f32.partialorder %v1635, 0.0
      %vm1669 = vcmp.ge.f32.partialorder %v1636, 0.0
      %v1670 = vstv %s1637
      %v1671 = vmul.f32 %v1670, %v1605
      %v1672 = vmul.f32 %v1670, %v1606
      %v1673 = vmul.f32 %v1670, %v1607
      %v1674 = vmul.f32 %v1670, %v1608
      %v1675 = vmul.f32 %v1670, %v1609
      %v1676 = vmul.f32 %v1670, %v1610
      %v1677 = vmul.f32 %v1670, %v1611
      %v1678 = vmul.f32 %v1670, %v1612
      %v1679 = vmul.f32 %v1670, %v1613
      %v1680 = vmul.f32 %v1670, %v1614
      %v1681 = vmul.f32 %v1670, %v1615
      %v1682 = vmul.f32 %v1670, %v1616
      %v1683 = vmul.f32 %v1670, %v1617
      %v1684 = vmul.f32 %v1670, %v1618
      %v1685 = vmul.f32 %v1670, %v1619
      %v1686 = vmul.f32 %v1670, %v1620
      %v1687 = vmul.f32 %v1670, %v1621
      %v1688 = vmul.f32 %v1670, %v1622
      %v1689 = vmul.f32 %v1670, %v1623
      %v1690 = vmul.f32 %v1670, %v1624
      %v1691 = vmul.f32 %v1670, %v1625
      %v1692 = vmul.f32 %v1670, %v1626
      %v1693 = vmul.f32 %v1670, %v1627
      %v1694 = vmul.f32 %v1670, %v1628
      %v1695 = vmul.f32 %v1670, %v1629
      %v1696 = vmul.f32 %v1670, %v1630
      %v1697 = vmul.f32 %v1670, %v1631
      %v1698 = vmul.f32 %v1670, %v1632
      %v1699 = vmul.f32 %v1670, %v1633
      %v1700 = vmul.f32 %v1670, %v1634
      %v1701 = vmul.f32 %v1670, %v1635
      %v1702 = vmul.f32 %v1670, %v1636
      %v1703 = vsel %vm1638, %v1605, %v1671
      %v1704 = vsel %vm1639, %v1606, %v1672
      %v1705 = vsel %vm1640, %v1607, %v1673
      %v1706 = vsel %vm1641, %v1608, %v1674
      %v1707 = vsel %vm1642, %v1609, %v1675
      %v1708 = vsel %vm1643, %v1610, %v1676
      %v1709 = vsel %vm1644, %v1611, %v1677
      %v1710 = vsel %vm1645, %v1612, %v1678
      %v1711 = vsel %vm1646, %v1613, %v1679
      %v1712 = vsel %vm1647, %v1614, %v1680
      %v1713 = vsel %vm1648, %v1615, %v1681
      %v1714 = vsel %vm1649, %v1616, %v1682
      %v1715 = vsel %vm1650, %v1617, %v1683
      %v1716 = vsel %vm1651, %v1618, %v1684
      %v1717 = vsel %vm1652, %v1619, %v1685
      %v1718 = vsel %vm1653, %v1620, %v1686
      %v1719 = vsel %vm1654, %v1621, %v1687
      %v1720 = vsel %vm1655, %v1622, %v1688
      %v1721 = vsel %vm1656, %v1623, %v1689
      %v1722 = vsel %vm1657, %v1624, %v1690
      %v1723 = vsel %vm1658, %v1625, %v1691
      %v1724 = vsel %vm1659, %v1626, %v1692
      %v1725 = vsel %vm1660, %v1627, %v1693
      %v1726 = vsel %vm1661, %v1628, %v1694
      %v1727 = vsel %vm1662, %v1629, %v1695
      %v1728 = vsel %vm1663, %v1630, %v1696
      %v1729 = vsel %vm1664, %v1631, %v1697
      %v1730 = vsel %vm1665, %v1632, %v1698
      %v1731 = vsel %vm1666, %v1633, %v1699
      %v1732 = vsel %vm1667, %v1634, %v1700
      %v1733 = vsel %vm1668, %v1635, %v1701
      %v1734 = vsel %vm1669, %v1636, %v1702
      %1735 = vst [vmem:[%s257] sm:$0xff] %v1703
      %1736 = vst [vmem:[%s257 + $0x8] sm:$0xff] %v1704
      %1737 = vst [vmem:[%s257 + $0x10] sm:$0xff] %v1705
      %1738 = vst [vmem:[%s257 + $0x18] sm:$0xff] %v1706
      %1739 = vst [vmem:[%s257 + $0x20] sm:$0xff] %v1707
      %1740 = vst [vmem:[%s257 + $0x28] sm:$0xff] %v1708
      %1741 = vst [vmem:[%s257 + $0x30] sm:$0xff] %v1709
      %1742 = vst [vmem:[%s257 + $0x38] sm:$0xff] %v1710
      %1743 = vst [vmem:[%s257 + $0x40] sm:$0xff] %v1711
      %1744 = vst [vmem:[%s257 + $0x48] sm:$0xff] %v1712
      %1745 = vst [vmem:[%s257 + $0x50] sm:$0xff] %v1713
      %1746 = vst [vmem:[%s257 + $0x58] sm:$0xff] %v1714
      %1747 = vst [vmem:[%s257 + $0x60] sm:$0xff] %v1715
      %1748 = vst [vmem:[%s257 + $0x68] sm:$0xff] %v1716
      %1749 = vst [vmem:[%s257 + $0x70] sm:$0xff] %v1717
      %1750 = vst [vmem:[%s257 + $0x78] sm:$0xff] %v1718
      %1751 = vst [vmem:[%s257 + $0x80] sm:$0xff] %v1719
      %1752 = vst [vmem:[%s257 + $0x88] sm:$0xff] %v1720
      %1753 = vst [vmem:[%s257 + $0x90] sm:$0xff] %v1721
      %1754 = vst [vmem:[%s257 + $0x98] sm:$0xff] %v1722
      %1755 = vst [vmem:[%s257 + $0xa0] sm:$0xff] %v1723
      %1756 = vst [vmem:[%s257 + $0xa8] sm:$0xff] %v1724
      %1757 = vst [vmem:[%s257 + $0xb0] sm:$0xff] %v1725
      %1758 = vst [vmem:[%s257 + $0xb8] sm:$0xff] %v1726
      %1759 = vst [vmem:[%s257 + $0xc0] sm:$0xff] %v1727
      %1760 = vst [vmem:[%s257 + $0xc8] sm:$0xff] %v1728
      %1761 = vst [vmem:[%s257 + $0xd0] sm:$0xff] %v1729
      %1762 = vst [vmem:[%s257 + $0xd8] sm:$0xff] %v1730
      %1763 = vst [vmem:[%s257 + $0xe0] sm:$0xff] %v1731
      %1764 = vst [vmem:[%s257 + $0xe8] sm:$0xff] %v1732
      %1765 = vst [vmem:[%s257 + $0xf0] sm:$0xff] %v1733
      %1766 = vst [vmem:[%s257 + $0xf8] sm:$0xff] %v1734
      %s1767 = smul.u32 32, %s18
      %p1768 = scmp.lt.s32.totalorder %s1767, 63
      %s1769 = scalar_select %p1768, %s1767, 63
      %s1770 = smul.addr %s1769, 8
      %s1771 = scalar_lea.vmem %s6, %s1770
      // Predicated region
      $region45: #{decoding_block.1} parent=43 // pred_check
        %p1772 = pneg %p167
      $region46: #{decoding_block.1} parent=43 // pred_check_branch
        %1774 = sbr.rel (%p1772) target = $region48
      $region47: #{decoding_block.1} parent=43 // pred_region
        %s1775 = smul.u32 32, %s18
      $region48: #{decoding_block.1} parent=43 // pred_fallthru
        _
    $region44: #{decoding_block.1} parent=5 // pred_fallthru
      _
    %p1776 = scmp.le.s32.totalorder 2, %s13
    // Predicated region
    $region49: #{decoding_block.1} parent=5 // pred_check
      %p1777 = pneg %p1776
    $region50: #{decoding_block.1} parent=5 // pred_check_branch
      %1779 = sbr.rel (%p1777) target = $region52
    $region51: #{decoding_block.1} parent=5 // pred_region
      %s1780 = ssub.s32 %s13, 2
      // Predicated region
      $region53: #{decoding_block.1} parent=51 // pred_check
        %p1781 = pneg %p173
      $region54: #{decoding_block.1} parent=51 // pred_check_branch
        %1783 = sbr.rel (%p1781) target = $region56
      $region55: #{decoding_block.1} parent=51 // pred_region
        %s1784 = smul.u32 32, %s19
        %p1785 = scmp.lt.s32.totalorder %s1784, 63
        %s1786 = scalar_select %p1785, %s1784, 63
        %s1787 = smul.addr %s1786, 8
        %s1788 = scalar_lea.vmem %s6, %s1787
      $region56: #{decoding_block.1} parent=51 // pred_fallthru
        _
    $region52: #{decoding_block.1} parent=5 // pred_fallthru
      _
  $region6: #{decoding_block.1} parent=0 // loop_footer
    %s17 = sadd.s32 1, %s13
  $region7: #{decoding_block.1} parent=0 // loop_footer_branch
    %12 = sbr.rel target = $region3
  $region8: #{decoding_block.1} parent=0 // loop_exit
    _

</llo_original>
